<compile_context>
chip_gen: v7x
topology: tpu7x:2x2x1
jax: 0.10.0
libtpu: 0.0.40
codegen_flags: <defaults>
</compile_context>

<pallas_src>
import functools

import jax
import jax.numpy as jnp
from jax.experimental import pallas as pl
from jax.experimental.pallas import tpu as pltpu


# ----------------------------- model dims -----------------------------------
D_MODEL = 32        # d_model
NHEAD = 4           # nhead
HEAD_DIM = D_MODEL // NHEAD
DIM_FF = 64         # dim_feedforward (kept small for the synthetic example)
LN_EPS = 1e-5


# ------------------------------ kernel ---------------------------------------
def decoder_layer_kernel(
    xq_ref, xkv_ref,
    wqkv_s_ref, wo_s_ref,            # self-attn  (bf16): [C,3C], [C,C]
    wq_c_ref, wkv_c_ref, wo_c_ref,   # cross-attn (bf16): [C,C], [C,2C], [C,C]
    w1_ref, w2_ref,                  # FFN        (bf16): [C,FF], [FF,C]
    bqkv_s_ref, bkv_c_ref, b1_ref,   # f32 biases: [1,3C], [1,2C], [1,FF]
    vec_ref,                         # f32 [10,C]: bo_s, bq_c, bo_c, b2, ln_g(3), ln_b(3)
    out_ref,
    *, batch_block, n_q, n_k,
):
    C = D_MODEL
    Dh = HEAD_DIM

    x = xq_ref[...].astype(jnp.float32)        # [Bb*Nq, C]  (batch folded into M)
    x_kv = xkv_ref[...].astype(jnp.float32)    # [Bb*Nk, C]
    vec = vec_ref[...]                         # [10, C] f32

    bo_s, bq_c, bo_c, b2 = vec[0:1], vec[1:2], vec[2:3], vec[3:4]
    ln_g, ln_b = vec[4:7], vec[7:10]

    def layer_norm(v, row):
        # single-pass stats: two independent reductions, var = E[x^2] - mu^2
        mu = jnp.mean(v, axis=-1, keepdims=True)
        ms = jnp.mean(v * v, axis=-1, keepdims=True)
        var = ms - mu * mu
        return (v - mu) * jax.lax.rsqrt(var + LN_EPS) * ln_g[row:row + 1] + ln_b[row:row + 1]

    def attend(q, k, v, nq, nk):
        """q [Bb*nq, C], k/v [Bb*nk, C] (f32) -> head-concatenated PV [Bb*nq, C] (f32)."""
        qb = q.astype(jnp.bfloat16)
        kb = k.astype(jnp.bfloat16)
        vb = v.astype(jnp.bfloat16)
        heads = []
        for h in range(NHEAD):                 # static unroll; only tiny [nq,nk] work
            lo = h * Dh
            q3 = qb[:, lo:lo + Dh].reshape(batch_block, nq, Dh)
            k3 = kb[:, lo:lo + Dh].reshape(batch_block, nk, Dh)
            v3 = vb[:, lo:lo + Dh].reshape(batch_block, nk, Dh)
            s = jnp.einsum("bqd,bkd->bqk", q3, k3,
                           preferred_element_type=jnp.float32)          # [Bb, nq, nk]
            s = s - jnp.max(s, axis=-1, keepdims=True)
            p = jnp.exp(s)
            p = p * pl.reciprocal(jnp.sum(p, axis=-1, keepdims=True), approx=True)
            heads.append(jnp.einsum("bqk,bkd->bqd", p.astype(jnp.bfloat16), v3,
                                    preferred_element_type=jnp.float32))  # [Bb, nq, Dh]
        pv = jnp.concatenate(heads, axis=-1)                             # [Bb, nq, C]
        return pv.reshape(batch_block * nq, C)

    # ---- self-attention: one fused [M,C]x[C,3C] QKV matmul, one [M,C]x[C,C] out-proj ----
    qkv = jnp.dot(x.astype(jnp.bfloat16), wqkv_s_ref[...],
                  preferred_element_type=jnp.float32) + bqkv_s_ref[...]   # [M, 3C]
    pv = attend(qkv[:, :C], qkv[:, C:2 * C], qkv[:, 2 * C:], n_q, n_q)
    sa = jnp.dot(pv.astype(jnp.bfloat16), wo_s_ref[...],
                 preferred_element_type=jnp.float32) + bo_s
    x = layer_norm(x + sa, 0)

    # ---- cross-attention: Q from x, fused KV from the key input ----
    q_c = jnp.dot(x.astype(jnp.bfloat16), wq_c_ref[...],
                  preferred_element_type=jnp.float32) + bq_c              # [M, C]
    kv_c = jnp.dot(x_kv.astype(jnp.bfloat16), wkv_c_ref[...],
                   preferred_element_type=jnp.float32) + bkv_c_ref[...]   # [Mk, 2C]
    pv = attend(q_c, kv_c[:, :C], kv_c[:, C:], n_q, n_k)
    ca = jnp.dot(pv.astype(jnp.bfloat16), wo_c_ref[...],
                 preferred_element_type=jnp.float32) + bo_c
    x = layer_norm(x + ca, 1)

    # ---- feed-forward (relu) ----
    hmid = jnp.dot(x.astype(jnp.bfloat16), w1_ref[...],
                   preferred_element_type=jnp.float32) + b1_ref[...]
    hmid = jnp.maximum(hmid, 0.0)
    ff = jnp.dot(hmid.astype(jnp.bfloat16), w2_ref[...],
                 preferred_element_type=jnp.float32) + b2
    x = layer_norm(x + ff, 2)

    out_ref[...] = x.astype(out_ref.dtype)


# ------------------------------ wrapper ---------------------------------------
def _full(shape):
    return pl.BlockSpec(shape, lambda b: (0,) * len(shape))


def transformer_decoder_layer(query_bcn, key_bcn, params, batch_block=None):
    """query_bcn [B, C, Nq], key_bcn [B, C, Nk] -> [B, C, Nq]  (PyTorch layout)."""
    B, C, Nq = query_bcn.shape
    Nk = key_bcn.shape[2]
    assert C == D_MODEL
    assert Nq % 8 == 0 and Nk % 8 == 0, "sequence lengths must be sublane (8) aligned"

    scale = 1.0 / float(HEAD_DIM) ** 0.5

    # --- weight prep hoisted out of the kernel: fused QKV, 1/sqrt(Dh) folded into Q,
    #     MXU operands cast to bf16 (f32 accumulation inside the kernel) ---
    w_in_s, b_in_s = params["w_in_self"], params["b_in_self"]
    w_in_c, b_in_c = params["w_in_cross"], params["b_in_cross"]

    w_qkv_s = jnp.concatenate([w_in_s[:, :C] * scale, w_in_s[:, C:]], 1).astype(jnp.bfloat16)
    b_qkv_s = jnp.concatenate([b_in_s[:, :C] * scale, b_in_s[:, C:]], 1)      # [1, 3C] f32
    w_q_c = (w_in_c[:, :C] * scale).astype(jnp.bfloat16)                      # [C, C]
    w_kv_c = w_in_c[:, C:].astype(jnp.bfloat16)                               # [C, 2C]
    b_kv_c = b_in_c[:, C:]                                                    # [1, 2C] f32
    w_o_s = params["w_out_self"].astype(jnp.bfloat16)
    w_o_c = params["w_out_cross"].astype(jnp.bfloat16)
    w1 = params["w1"].astype(jnp.bfloat16)
    w2 = params["w2"].astype(jnp.bfloat16)

    # pack the remaining C-wide vectors into one operand (fewer DMAs / BlockSpecs)
    vec = jnp.concatenate([
        params["b_out_self"],          # row 0  : self-attn out-proj bias
        b_in_c[:, :C] * scale,         # row 1  : cross-attn Q bias (scale folded)
        params["b_out_cross"],         # row 2  : cross-attn out-proj bias
        params["b2"],                  # row 3  : FFN second bias
        params["ln_gamma"],            # rows 4-6
        params["ln_beta"],             # rows 7-9
    ], axis=0).astype(jnp.float32)     # [10, C]

    # --- batch blocking: pad B up to a multiple of bb (never shrink bb); keep >= 2
    #     grid steps whenever B >= 2 so both v7x TensorCores get work ---
    cap = batch_block or 256           # ~1-3 MiB of f32 activations per block
    bb = max(1, min(cap, -(-B // 2)))
    n_blk = -(-B // bb)
    Bp = n_blk * bb

    # fold batch into the matmul M dim (tiny XLA-side transpose/reshape)
    xq = jnp.transpose(query_bcn, (0, 2, 1)).reshape(B * Nq, C)
    xk = jnp.transpose(key_bcn, (0, 2, 1)).reshape(B * Nk, C)
    if Bp != B:
        xq = jnp.pad(xq, ((0, (Bp - B) * Nq), (0, 0)))
        xk = jnp.pad(xk, ((0, (Bp - B) * Nk), (0, 0)))

    in_specs = [
        pl.BlockSpec((bb * Nq, C), lambda b: (b, 0)),
        pl.BlockSpec((bb * Nk, C), lambda b: (b, 0)),
        _full((C, 3 * C)), _full((C, C)),                          # w_qkv_s, w_o_s
        _full((C, C)), _full((C, 2 * C)), _full((C, C)),           # w_q_c, w_kv_c, w_o_c
        _full((C, DIM_FF)), _full((DIM_FF, C)),                    # w1, w2
        _full((1, 3 * C)), _full((1, 2 * C)), _full((1, DIM_FF)),  # b_qkv_s, b_kv_c, b1
        _full((10, C)),                                            # vec
    ]

    out2d = pl.pallas_call(
        functools.partial(decoder_layer_kernel, batch_block=bb, n_q=Nq, n_k=Nk),
        out_shape=jax.ShapeDtypeStruct((Bp * Nq, C), query_bcn.dtype),
        grid=(n_blk,),
        in_specs=in_specs,
        out_specs=pl.BlockSpec((bb * Nq, C), lambda b: (b, 0)),
        compiler_params=pltpu.CompilerParams(dimension_semantics=("parallel",)),
    )(
        xq, xk,
        w_qkv_s, w_o_s, w_q_c, w_kv_c, w_o_c, w1, w2,
        b_qkv_s, b_kv_c, params["b1"], vec,
    )

    out2d = out2d[:B * Nq]                                         # drop batch padding
    return jnp.transpose(out2d.reshape(B, Nq, C), (0, 2, 1))       # back to [B, C, Nq]


# -------------------------- pure-JAX reference (exact f32) --------------------
def _ref_ln(x, gamma, beta):
    mu = jnp.mean(x, axis=-1, keepdims=True)
    var = jnp.mean((x - mu) ** 2, axis=-1, keepdims=True)
    return (x - mu) * jax.lax.rsqrt(var + LN_EPS) * gamma + beta


def _ref_mha(xq, xkv, w_in, b_in, w_out, b_out):
    C = D_MODEL
    q = xq @ w_in[:, :C] + b_in[0, :C]
    k = xkv @ w_in[:, C:2 * C] + b_in[0, C:2 * C]
    v = xkv @ w_in[:, 2 * C:] + b_in[0, 2 * C:]
    Nq, Nk = q.shape[0], k.shape[0]
    qh = q.reshape(Nq, NHEAD, HEAD_DIM).transpose(1, 0, 2) / (HEAD_DIM ** 0.5)
    kh = k.reshape(Nk, NHEAD, HEAD_DIM).transpose(1, 0, 2)
    vh = v.reshape(Nk, NHEAD, HEAD_DIM).transpose(1, 0, 2)
    s = jnp.einsum("hqd,hkd->hqk", qh, kh)
    p = jax.nn.softmax(s, axis=-1)
    o = jnp.einsum("hqk,hkd->hqd", p, vh).transpose(1, 0, 2).reshape(Nq, C)
    return o @ w_out + b_out[0]


def _ref_layer(query_bcn, key_bcn, p):
    def one(xq, xkv):
        x = xq.T                               # [Nq, C]
        kv = xkv.T
        x = _ref_ln(x + _ref_mha(x, x, p["w_in_self"], p["b_in_self"],
                                 p["w_out_self"], p["b_out_self"]),
                    p["ln_gamma"][0], p["ln_beta"][0])
        x = _ref_ln(x + _ref_mha(x, kv, p["w_in_cross"], p["b_in_cross"],
                                 p["w_out_cross"], p["b_out_cross"]),
                    p["ln_gamma"][1], p["ln_beta"][1])
        ff = jnp.maximum(x @ p["w1"] + p["b1"][0], 0.0) @ p["w2"] + p["b2"][0]
        x = _ref_ln(x + ff, p["ln_gamma"][2], p["ln_beta"][2])
        return x.T                             # [C, Nq]
    return jax.vmap(one)(query_bcn, key_bcn)


# ------------------------------ main ------------------------------------------
if __name__ == "__main__":
    B, Nq, Nk = 2, 8, 16
    C = D_MODEL

    key = jax.random.PRNGKey(0)
    keys = jax.random.split(key, 16)

    def rnd(k, shape, scale=0.05):
        return scale * jax.random.normal(k, shape, dtype=jnp.float32)

    params = {
        "w_in_self":  rnd(keys[0], (C, 3 * C)),
        "b_in_self":  rnd(keys[1], (1, 3 * C)),
        "w_out_self": rnd(keys[2], (C, C)),
        "b_out_self": rnd(keys[3], (1, C)),
        "w_in_cross":  rnd(keys[4], (C, 3 * C)),
        "b_in_cross":  rnd(keys[5], (1, 3 * C)),
        "w_out_cross": rnd(keys[6], (C, C)),
        "b_out_cross": rnd(keys[7], (1, C)),
        "w1": rnd(keys[8], (C, DIM_FF)),
        "b1": rnd(keys[9], (1, DIM_FF)),
        "w2": rnd(keys[10], (DIM_FF, C)),
        "b2": rnd(keys[11], (1, C)),
        "ln_gamma": jnp.ones((3, C), jnp.float32) + rnd(keys[12], (3, C)),
        "ln_beta":  rnd(keys[13], (3, C)),
    }

    query = jax.random.normal(keys[14], (B, C, Nq), dtype=jnp.float32)  # [B, C, Nq]
    key_t = jax.random.normal(keys[15], (B, C, Nk), dtype=jnp.float32)  # [B, C, Nk]

    out = jax.block_until_ready(transformer_decoder_layer(query, key_t, params))
    ref = jax.block_until_ready(_ref_layer(query, key_t, params))

    assert out.shape == (B, C, Nq), out.shape
    # tolerance vs the exact f32 reference: kernel uses bf16 MXU operands (f32
    # accumulation) and an approx (EUP) reciprocal for the softmax denominator.
    err = float(jnp.max(jnp.abs(out - ref)))
    assert jnp.allclose(out, ref, atol=3e-2, rtol=3e-2), err
    print("KERNEL_OK")
</pallas_src>

<mosaic_0001>
module attributes {stable_mosaic.version = 11 : i64} {
  func.func @decoder_layer_kernel(%arg0: i32, %arg1: memref<8x32xf32, #tpu.memory_space<vmem>>, %arg2: memref<16x32xf32, #tpu.memory_space<vmem>>, %arg3: memref<32x96xbf16, #tpu.memory_space<vmem>>, %arg4: memref<32x32xbf16, #tpu.memory_space<vmem>>, %arg5: memref<32x32xbf16, #tpu.memory_space<vmem>>, %arg6: memref<32x64xbf16, #tpu.memory_space<vmem>>, %arg7: memref<32x32xbf16, #tpu.memory_space<vmem>>, %arg8: memref<32x64xbf16, #tpu.memory_space<vmem>>, %arg9: memref<64x32xbf16, #tpu.memory_space<vmem>>, %arg10: memref<1x96xf32, #tpu.memory_space<vmem>>, %arg11: memref<1x64xf32, #tpu.memory_space<vmem>>, %arg12: memref<1x64xf32, #tpu.memory_space<vmem>>, %arg13: memref<10x32xf32, #tpu.memory_space<vmem>>, %arg14: memref<8x32xf32, #tpu.memory_space<vmem>>) attributes {dimension_semantics = [#tpu.dimension_semantics<parallel>], iteration_bounds = array<i64: 2>, scalar_prefetch = 0 : i64, scratch_operands = 0 : i64, tpu.core_type = #tpu.core_type<tc>, window_params = [{transform_indices = @transform_0, window_bounds = array<i64: 8, 32>}, {transform_indices = @transform_1, window_bounds = array<i64: 16, 32>}, {pipeline_mode = #tpu.pipeline_mode<synchronous>, transform_indices = @transform_2, window_bounds = array<i64: 32, 96>}, {pipeline_mode = #tpu.pipeline_mode<synchronous>, transform_indices = @transform_3, window_bounds = array<i64: 32, 32>}, {pipeline_mode = #tpu.pipeline_mode<synchronous>, transform_indices = @transform_4, window_bounds = array<i64: 32, 32>}, {pipeline_mode = #tpu.pipeline_mode<synchronous>, transform_indices = @transform_5, window_bounds = array<i64: 32, 64>}, {pipeline_mode = #tpu.pipeline_mode<synchronous>, transform_indices = @transform_6, window_bounds = array<i64: 32, 32>}, {pipeline_mode = #tpu.pipeline_mode<synchronous>, transform_indices = @transform_7, window_bounds = array<i64: 32, 64>}, {pipeline_mode = #tpu.pipeline_mode<synchronous>, transform_indices = @transform_8, window_bounds = array<i64: 64, 32>}, {pipeline_mode = #tpu.pipeline_mode<synchronous>, transform_indices = @transform_9, window_bounds = array<i64: 1, 96>}, {pipeline_mode = #tpu.pipeline_mode<synchronous>, transform_indices = @transform_10, window_bounds = array<i64: 1, 64>}, {pipeline_mode = #tpu.pipeline_mode<synchronous>, transform_indices = @transform_11, window_bounds = array<i64: 1, 64>}, {pipeline_mode = #tpu.pipeline_mode<synchronous>, transform_indices = @transform_12, window_bounds = array<i64: 10, 32>}, {transform_indices = @transform_13, window_bounds = array<i64: 8, 32>}]} {
    %c0 = arith.constant 0 : index
    %c0_0 = arith.constant 0 : index
    %0 = vector.load %arg1[%c0, %c0_0] : memref<8x32xf32, #tpu.memory_space<vmem>>, vector<8x32xf32>
    %c0_1 = arith.constant 0 : index
    %c0_2 = arith.constant 0 : index
    %1 = vector.load %arg2[%c0_1, %c0_2] : memref<16x32xf32, #tpu.memory_space<vmem>>, vector<16x32xf32>
    %c0_3 = arith.constant 0 : index
    %c0_4 = arith.constant 0 : index
    %2 = vector.load %arg13[%c0_3, %c0_4] : memref<10x32xf32, #tpu.memory_space<vmem>>, vector<10x32xf32>
    %3 = vector.extract_strided_slice %2 {offsets = [0, 0], sizes = [1, 32], strides = [1, 1]} : vector<10x32xf32> to vector<1x32xf32>
    %4 = vector.extract_strided_slice %2 {offsets = [1, 0], sizes = [1, 32], strides = [1, 1]} : vector<10x32xf32> to vector<1x32xf32>
    %5 = vector.extract_strided_slice %2 {offsets = [2, 0], sizes = [1, 32], strides = [1, 1]} : vector<10x32xf32> to vector<1x32xf32>
    %6 = vector.extract_strided_slice %2 {offsets = [3, 0], sizes = [1, 32], strides = [1, 1]} : vector<10x32xf32> to vector<1x32xf32>
    %7 = vector.extract_strided_slice %2 {offsets = [4, 0], sizes = [3, 32], strides = [1, 1]} : vector<10x32xf32> to vector<3x32xf32>
    %8 = vector.extract_strided_slice %2 {offsets = [7, 0], sizes = [3, 32], strides = [1, 1]} : vector<10x32xf32> to vector<3x32xf32>
    %9 = arith.truncf %0 : vector<8x32xf32> to vector<8x32xbf16>
    %c0_5 = arith.constant 0 : index
    %c0_6 = arith.constant 0 : index
    %10 = vector.load %arg3[%c0_5, %c0_6] : memref<32x96xbf16, #tpu.memory_space<vmem>>, vector<32x96xbf16>
    %cst = arith.constant dense<0.000000e+00> : vector<8x96xf32>
    %11 = tpu.matmul %9, %10, %cst {dimension_numbers = #tpu.dot_dimension_numbers<[1], [0], [0], [1], [0, 0, 1, 1], [], []>} : vector<8x32xbf16>, vector<32x96xbf16>, vector<8x96xf32> -> vector<8x96xf32>
    %c0_7 = arith.constant 0 : index
    %c0_8 = arith.constant 0 : index
    %12 = vector.load %arg10[%c0_7, %c0_8] : memref<1x96xf32, #tpu.memory_space<vmem>>, vector<1x96xf32>
    %13 = vector.broadcast %12 : vector<1x96xf32> to vector<8x96xf32>
    %14 = arith.addf %11, %13 : vector<8x96xf32>
    %15 = vector.extract_strided_slice %14 {offsets = [0, 0], sizes = [8, 32], strides = [1, 1]} : vector<8x96xf32> to vector<8x32xf32>
    %16 = vector.extract_strided_slice %14 {offsets = [0, 32], sizes = [8, 32], strides = [1, 1]} : vector<8x96xf32> to vector<8x32xf32>
    %17 = vector.extract_strided_slice %14 {offsets = [0, 64], sizes = [8, 32], strides = [1, 1]} : vector<8x96xf32> to vector<8x32xf32>
    %18 = arith.truncf %15 : vector<8x32xf32> to vector<8x32xbf16>
    %19 = arith.truncf %16 : vector<8x32xf32> to vector<8x32xbf16>
    %20 = arith.truncf %17 : vector<8x32xf32> to vector<8x32xbf16>
    %21 = vector.extract_strided_slice %18 {offsets = [0, 0], sizes = [8, 8], strides = [1, 1]} : vector<8x32xbf16> to vector<8x8xbf16>
    %22 = vector.shape_cast %21 : vector<8x8xbf16> to vector<1x8x8xbf16>
    %23 = vector.extract_strided_slice %19 {offsets = [0, 0], sizes = [8, 8], strides = [1, 1]} : vector<8x32xbf16> to vector<8x8xbf16>
    %24 = vector.shape_cast %23 : vector<8x8xbf16> to vector<1x8x8xbf16>
    %25 = vector.extract_strided_slice %20 {offsets = [0, 0], sizes = [8, 8], strides = [1, 1]} : vector<8x32xbf16> to vector<8x8xbf16>
    %26 = vector.shape_cast %25 : vector<8x8xbf16> to vector<1x8x8xbf16>
    "tpu.trace_start"() <{level = 10 : i32, message = "bqd,bkd->bqk"}> : () -> ()
    %cst_9 = arith.constant dense<0.000000e+00> : vector<1x8x8xf32>
    %27 = tpu.matmul %22, %24, %cst_9 {dimension_numbers = #tpu.dot_dimension_numbers<[2], [2], [1], [1], [0, 0, 0, 1, 1, 1], [0], [0]>} : vector<1x8x8xbf16>, vector<1x8x8xbf16>, vector<1x8x8xf32> -> vector<1x8x8xf32>
    "tpu.trace_stop"() : () -> ()
    %cst_10 = arith.constant dense<0xFF800000> : vector<1x8xf32>
    %28 = vector.multi_reduction <maximumf>, %27, %cst_10 [2] : vector<1x8x8xf32> to vector<1x8xf32>
    %29 = vector.shape_cast %28 : vector<1x8xf32> to vector<1x8x1xf32>
    %30 = vector.broadcast %29 : vector<1x8x1xf32> to vector<1x8x8xf32>
    %31 = arith.subf %27, %30 : vector<1x8x8xf32>
    %32 = math.exp %31 : vector<1x8x8xf32>
    %cst_11 = arith.constant dense<0.000000e+00> : vector<1x8xf32>
    %33 = vector.multi_reduction <add>, %32, %cst_11 [2] : vector<1x8x8xf32> to vector<1x8xf32>
    %34 = vector.shape_cast %33 : vector<1x8xf32> to vector<1x8x1xf32>
    %35 = tpu.reciprocal %34 {approx = true} : vector<1x8x1xf32> -> vector<1x8x1xf32>
    %36 = vector.broadcast %35 : vector<1x8x1xf32> to vector<1x8x8xf32>
    %37 = arith.mulf %32, %36 : vector<1x8x8xf32>
    %38 = arith.truncf %37 : vector<1x8x8xf32> to vector<1x8x8xbf16>
    "tpu.trace_start"() <{level = 10 : i32, message = "bqk,bkd->bqd"}> : () -> ()
    %cst_12 = arith.constant dense<0.000000e+00> : vector<1x8x8xf32>
    %39 = tpu.matmul %38, %26, %cst_12 {dimension_numbers = #tpu.dot_dimension_numbers<[2], [1], [1], [2], [0, 0, 0, 1, 1, 2], [0], [0]>} : vector<1x8x8xbf16>, vector<1x8x8xbf16>, vector<1x8x8xf32> -> vector<1x8x8xf32>
    "tpu.trace_stop"() : () -> ()
    %40 = vector.extract_strided_slice %18 {offsets = [0, 8], sizes = [8, 8], strides = [1, 1]} : vector<8x32xbf16> to vector<8x8xbf16>
    %41 = vector.shape_cast %40 : vector<8x8xbf16> to vector<1x8x8xbf16>
    %42 = vector.extract_strided_slice %19 {offsets = [0, 8], sizes = [8, 8], strides = [1, 1]} : vector<8x32xbf16> to vector<8x8xbf16>
    %43 = vector.shape_cast %42 : vector<8x8xbf16> to vector<1x8x8xbf16>
    %44 = vector.extract_strided_slice %20 {offsets = [0, 8], sizes = [8, 8], strides = [1, 1]} : vector<8x32xbf16> to vector<8x8xbf16>
    %45 = vector.shape_cast %44 : vector<8x8xbf16> to vector<1x8x8xbf16>
    "tpu.trace_start"() <{level = 10 : i32, message = "bqd,bkd->bqk"}> : () -> ()
    %cst_13 = arith.constant dense<0.000000e+00> : vector<1x8x8xf32>
    %46 = tpu.matmul %41, %43, %cst_13 {dimension_numbers = #tpu.dot_dimension_numbers<[2], [2], [1], [1], [0, 0, 0, 1, 1, 1], [0], [0]>} : vector<1x8x8xbf16>, vector<1x8x8xbf16>, vector<1x8x8xf32> -> vector<1x8x8xf32>
    "tpu.trace_stop"() : () -> ()
    %cst_14 = arith.constant dense<0xFF800000> : vector<1x8xf32>
    %47 = vector.multi_reduction <maximumf>, %46, %cst_14 [2] : vector<1x8x8xf32> to vector<1x8xf32>
    %48 = vector.shape_cast %47 : vector<1x8xf32> to vector<1x8x1xf32>
    %49 = vector.broadcast %48 : vector<1x8x1xf32> to vector<1x8x8xf32>
    %50 = arith.subf %46, %49 : vector<1x8x8xf32>
    %51 = math.exp %50 : vector<1x8x8xf32>
    %cst_15 = arith.constant dense<0.000000e+00> : vector<1x8xf32>
    %52 = vector.multi_reduction <add>, %51, %cst_15 [2] : vector<1x8x8xf32> to vector<1x8xf32>
    %53 = vector.shape_cast %52 : vector<1x8xf32> to vector<1x8x1xf32>
    %54 = tpu.reciprocal %53 {approx = true} : vector<1x8x1xf32> -> vector<1x8x1xf32>
    %55 = vector.broadcast %54 : vector<1x8x1xf32> to vector<1x8x8xf32>
    %56 = arith.mulf %51, %55 : vector<1x8x8xf32>
    %57 = arith.truncf %56 : vector<1x8x8xf32> to vector<1x8x8xbf16>
    "tpu.trace_start"() <{level = 10 : i32, message = "bqk,bkd->bqd"}> : () -> ()
    %cst_16 = arith.constant dense<0.000000e+00> : vector<1x8x8xf32>
    %58 = tpu.matmul %57, %45, %cst_16 {dimension_numbers = #tpu.dot_dimension_numbers<[2], [1], [1], [2], [0, 0, 0, 1, 1, 2], [0], [0]>} : vector<1x8x8xbf16>, vector<1x8x8xbf16>, vector<1x8x8xf32> -> vector<1x8x8xf32>
    "tpu.trace_stop"() : () -> ()
    %59 = vector.extract_strided_slice %18 {offsets = [0, 16], sizes = [8, 8], strides = [1, 1]} : vector<8x32xbf16> to vector<8x8xbf16>
    %60 = vector.shape_cast %59 : vector<8x8xbf16> to vector<1x8x8xbf16>
    %61 = vector.extract_strided_slice %19 {offsets = [0, 16], sizes = [8, 8], strides = [1, 1]} : vector<8x32xbf16> to vector<8x8xbf16>
    %62 = vector.shape_cast %61 : vector<8x8xbf16> to vector<1x8x8xbf16>
    %63 = vector.extract_strided_slice %20 {offsets = [0, 16], sizes = [8, 8], strides = [1, 1]} : vector<8x32xbf16> to vector<8x8xbf16>
    %64 = vector.shape_cast %63 : vector<8x8xbf16> to vector<1x8x8xbf16>
    "tpu.trace_start"() <{level = 10 : i32, message = "bqd,bkd->bqk"}> : () -> ()
    %cst_17 = arith.constant dense<0.000000e+00> : vector<1x8x8xf32>
    %65 = tpu.matmul %60, %62, %cst_17 {dimension_numbers = #tpu.dot_dimension_numbers<[2], [2], [1], [1], [0, 0, 0, 1, 1, 1], [0], [0]>} : vector<1x8x8xbf16>, vector<1x8x8xbf16>, vector<1x8x8xf32> -> vector<1x8x8xf32>
    "tpu.trace_stop"() : () -> ()
    %cst_18 = arith.constant dense<0xFF800000> : vector<1x8xf32>
    %66 = vector.multi_reduction <maximumf>, %65, %cst_18 [2] : vector<1x8x8xf32> to vector<1x8xf32>
    %67 = vector.shape_cast %66 : vector<1x8xf32> to vector<1x8x1xf32>
    %68 = vector.broadcast %67 : vector<1x8x1xf32> to vector<1x8x8xf32>
    %69 = arith.subf %65, %68 : vector<1x8x8xf32>
    %70 = math.exp %69 : vector<1x8x8xf32>
    %cst_19 = arith.constant dense<0.000000e+00> : vector<1x8xf32>
    %71 = vector.multi_reduction <add>, %70, %cst_19 [2] : vector<1x8x8xf32> to vector<1x8xf32>
    %72 = vector.shape_cast %71 : vector<1x8xf32> to vector<1x8x1xf32>
    %73 = tpu.reciprocal %72 {approx = true} : vector<1x8x1xf32> -> vector<1x8x1xf32>
    %74 = vector.broadcast %73 : vector<1x8x1xf32> to vector<1x8x8xf32>
    %75 = arith.mulf %70, %74 : vector<1x8x8xf32>
    %76 = arith.truncf %75 : vector<1x8x8xf32> to vector<1x8x8xbf16>
    "tpu.trace_start"() <{level = 10 : i32, message = "bqk,bkd->bqd"}> : () -> ()
    %cst_20 = arith.constant dense<0.000000e+00> : vector<1x8x8xf32>
    %77 = tpu.matmul %76, %64, %cst_20 {dimension_numbers = #tpu.dot_dimension_numbers<[2], [1], [1], [2], [0, 0, 0, 1, 1, 2], [0], [0]>} : vector<1x8x8xbf16>, vector<1x8x8xbf16>, vector<1x8x8xf32> -> vector<1x8x8xf32>
    "tpu.trace_stop"() : () -> ()
    %78 = vector.extract_strided_slice %18 {offsets = [0, 24], sizes = [8, 8], strides = [1, 1]} : vector<8x32xbf16> to vector<8x8xbf16>
    %79 = vector.shape_cast %78 : vector<8x8xbf16> to vector<1x8x8xbf16>
    %80 = vector.extract_strided_slice %19 {offsets = [0, 24], sizes = [8, 8], strides = [1, 1]} : vector<8x32xbf16> to vector<8x8xbf16>
    %81 = vector.shape_cast %80 : vector<8x8xbf16> to vector<1x8x8xbf16>
    %82 = vector.extract_strided_slice %20 {offsets = [0, 24], sizes = [8, 8], strides = [1, 1]} : vector<8x32xbf16> to vector<8x8xbf16>
    %83 = vector.shape_cast %82 : vector<8x8xbf16> to vector<1x8x8xbf16>
    "tpu.trace_start"() <{level = 10 : i32, message = "bqd,bkd->bqk"}> : () -> ()
    %cst_21 = arith.constant dense<0.000000e+00> : vector<1x8x8xf32>
    %84 = tpu.matmul %79, %81, %cst_21 {dimension_numbers = #tpu.dot_dimension_numbers<[2], [2], [1], [1], [0, 0, 0, 1, 1, 1], [0], [0]>} : vector<1x8x8xbf16>, vector<1x8x8xbf16>, vector<1x8x8xf32> -> vector<1x8x8xf32>
    "tpu.trace_stop"() : () -> ()
    %cst_22 = arith.constant dense<0xFF800000> : vector<1x8xf32>
    %85 = vector.multi_reduction <maximumf>, %84, %cst_22 [2] : vector<1x8x8xf32> to vector<1x8xf32>
    %86 = vector.shape_cast %85 : vector<1x8xf32> to vector<1x8x1xf32>
    %87 = vector.broadcast %86 : vector<1x8x1xf32> to vector<1x8x8xf32>
    %88 = arith.subf %84, %87 : vector<1x8x8xf32>
    %89 = math.exp %88 : vector<1x8x8xf32>
    %cst_23 = arith.constant dense<0.000000e+00> : vector<1x8xf32>
    %90 = vector.multi_reduction <add>, %89, %cst_23 [2] : vector<1x8x8xf32> to vector<1x8xf32>
    %91 = vector.shape_cast %90 : vector<1x8xf32> to vector<1x8x1xf32>
    %92 = tpu.reciprocal %91 {approx = true} : vector<1x8x1xf32> -> vector<1x8x1xf32>
    %93 = vector.broadcast %92 : vector<1x8x1xf32> to vector<1x8x8xf32>
    %94 = arith.mulf %89, %93 : vector<1x8x8xf32>
    %95 = arith.truncf %94 : vector<1x8x8xf32> to vector<1x8x8xbf16>
    "tpu.trace_start"() <{level = 10 : i32, message = "bqk,bkd->bqd"}> : () -> ()
    %cst_24 = arith.constant dense<0.000000e+00> : vector<1x8x8xf32>
    %96 = tpu.matmul %95, %83, %cst_24 {dimension_numbers = #tpu.dot_dimension_numbers<[2], [1], [1], [2], [0, 0, 0, 1, 1, 2], [0], [0]>} : vector<1x8x8xbf16>, vector<1x8x8xbf16>, vector<1x8x8xf32> -> vector<1x8x8xf32>
    "tpu.trace_stop"() : () -> ()
    %97 = tpu.concatenate %39, %58, %77, %96 in 2 : vector<1x8x8xf32>, vector<1x8x8xf32>, vector<1x8x8xf32>, vector<1x8x8xf32> -> vector<1x8x32xf32>
    %98 = vector.shape_cast %97 : vector<1x8x32xf32> to vector<8x32xf32>
    %99 = arith.truncf %98 : vector<8x32xf32> to vector<8x32xbf16>
    %c0_25 = arith.constant 0 : index
    %c0_26 = arith.constant 0 : index
    %100 = vector.load %arg4[%c0_25, %c0_26] : memref<32x32xbf16, #tpu.memory_space<vmem>>, vector<32x32xbf16>
    %cst_27 = arith.constant dense<0.000000e+00> : vector<8x32xf32>
    %101 = tpu.matmul %99, %100, %cst_27 {dimension_numbers = #tpu.dot_dimension_numbers<[1], [0], [0], [1], [0, 0, 1, 1], [], []>} : vector<8x32xbf16>, vector<32x32xbf16>, vector<8x32xf32> -> vector<8x32xf32>
    %102 = vector.broadcast %3 : vector<1x32xf32> to vector<8x32xf32>
    %103 = arith.addf %101, %102 : vector<8x32xf32>
    %104 = arith.addf %0, %103 : vector<8x32xf32>
    %cst_28 = arith.constant dense<0.000000e+00> : vector<8xf32>
    %105 = vector.multi_reduction <add>, %104, %cst_28 [1] : vector<8x32xf32> to vector<8xf32>
    %106 = vector.shape_cast %105 : vector<8xf32> to vector<8x1xf32>
    %cst_29 = arith.constant 3.200000e+01 : f32
    %107 = vector.broadcast %cst_29 : f32 to vector<8x1xf32>
    %108 = arith.divf %106, %107 : vector<8x1xf32>
    %109 = arith.mulf %104, %104 : vector<8x32xf32>
    %cst_30 = arith.constant dense<0.000000e+00> : vector<8xf32>
    %110 = vector.multi_reduction <add>, %109, %cst_30 [1] : vector<8x32xf32> to vector<8xf32>
    %111 = vector.shape_cast %110 : vector<8xf32> to vector<8x1xf32>
    %cst_31 = arith.constant 3.200000e+01 : f32
    %112 = vector.broadcast %cst_31 : f32 to vector<8x1xf32>
    %113 = arith.divf %111, %112 : vector<8x1xf32>
    %114 = arith.mulf %108, %108 : vector<8x1xf32>
    %115 = arith.subf %113, %114 : vector<8x1xf32>
    %116 = vector.broadcast %108 : vector<8x1xf32> to vector<8x32xf32>
    %117 = arith.subf %104, %116 : vector<8x32xf32>
    %cst_32 = arith.constant 9.99999974E-6 : f32
    %118 = vector.broadcast %cst_32 : f32 to vector<8x1xf32>
    %119 = arith.addf %115, %118 : vector<8x1xf32>
    %120 = math.rsqrt %119 : vector<8x1xf32>
    %121 = vector.broadcast %120 : vector<8x1xf32> to vector<8x32xf32>
    %122 = arith.mulf %117, %121 : vector<8x32xf32>
    %123 = vector.extract_strided_slice %7 {offsets = [0, 0], sizes = [1, 32], strides = [1, 1]} : vector<3x32xf32> to vector<1x32xf32>
    %124 = vector.broadcast %123 : vector<1x32xf32> to vector<8x32xf32>
    %125 = arith.mulf %122, %124 : vector<8x32xf32>
    %126 = vector.extract_strided_slice %8 {offsets = [0, 0], sizes = [1, 32], strides = [1, 1]} : vector<3x32xf32> to vector<1x32xf32>
    %127 = vector.broadcast %126 : vector<1x32xf32> to vector<8x32xf32>
    %128 = arith.addf %125, %127 : vector<8x32xf32>
    %129 = arith.truncf %128 : vector<8x32xf32> to vector<8x32xbf16>
    %c0_33 = arith.constant 0 : index
    %c0_34 = arith.constant 0 : index
    %130 = vector.load %arg5[%c0_33, %c0_34] : memref<32x32xbf16, #tpu.memory_space<vmem>>, vector<32x32xbf16>
    %cst_35 = arith.constant dense<0.000000e+00> : vector<8x32xf32>
    %131 = tpu.matmul %129, %130, %cst_35 {dimension_numbers = #tpu.dot_dimension_numbers<[1], [0], [0], [1], [0, 0, 1, 1], [], []>} : vector<8x32xbf16>, vector<32x32xbf16>, vector<8x32xf32> -> vector<8x32xf32>
    %132 = vector.broadcast %4 : vector<1x32xf32> to vector<8x32xf32>
    %133 = arith.addf %131, %132 : vector<8x32xf32>
    %134 = arith.truncf %1 : vector<16x32xf32> to vector<16x32xbf16>
    %c0_36 = arith.constant 0 : index
    %c0_37 = arith.constant 0 : index
    %135 = vector.load %arg6[%c0_36, %c0_37] : memref<32x64xbf16, #tpu.memory_space<vmem>>, vector<32x64xbf16>
    %cst_38 = arith.constant dense<0.000000e+00> : vector<16x64xf32>
    %136 = tpu.matmul %134, %135, %cst_38 {dimension_numbers = #tpu.dot_dimension_numbers<[1], [0], [0], [1], [0, 0, 1, 1], [], []>} : vector<16x32xbf16>, vector<32x64xbf16>, vector<16x64xf32> -> vector<16x64xf32>
    %c0_39 = arith.constant 0 : index
    %c0_40 = arith.constant 0 : index
    %137 = vector.load %arg11[%c0_39, %c0_40] : memref<1x64xf32, #tpu.memory_space<vmem>>, vector<1x64xf32>
    %138 = vector.broadcast %137 : vector<1x64xf32> to vector<16x64xf32>
    %139 = arith.addf %136, %138 : vector<16x64xf32>
    %140 = vector.extract_strided_slice %139 {offsets = [0, 0], sizes = [16, 32], strides = [1, 1]} : vector<16x64xf32> to vector<16x32xf32>
    %141 = vector.extract_strided_slice %139 {offsets = [0, 32], sizes = [16, 32], strides = [1, 1]} : vector<16x64xf32> to vector<16x32xf32>
    %142 = arith.truncf %133 : vector<8x32xf32> to vector<8x32xbf16>
    %143 = arith.truncf %140 : vector<16x32xf32> to vector<16x32xbf16>
    %144 = arith.truncf %141 : vector<16x32xf32> to vector<16x32xbf16>
    %145 = vector.extract_strided_slice %142 {offsets = [0, 0], sizes = [8, 8], strides = [1, 1]} : vector<8x32xbf16> to vector<8x8xbf16>
    %146 = vector.shape_cast %145 : vector<8x8xbf16> to vector<1x8x8xbf16>
    %147 = vector.extract_strided_slice %143 {offsets = [0, 0], sizes = [16, 8], strides = [1, 1]} : vector<16x32xbf16> to vector<16x8xbf16>
    %148 = vector.shape_cast %147 : vector<16x8xbf16> to vector<1x16x8xbf16>
    %149 = vector.extract_strided_slice %144 {offsets = [0, 0], sizes = [16, 8], strides = [1, 1]} : vector<16x32xbf16> to vector<16x8xbf16>
    %150 = vector.shape_cast %149 : vector<16x8xbf16> to vector<1x16x8xbf16>
    "tpu.trace_start"() <{level = 10 : i32, message = "bqd,bkd->bqk"}> : () -> ()
    %cst_41 = arith.constant dense<0.000000e+00> : vector<1x8x16xf32>
    %151 = tpu.matmul %146, %148, %cst_41 {dimension_numbers = #tpu.dot_dimension_numbers<[2], [2], [1], [1], [0, 0, 0, 1, 1, 1], [0], [0]>} : vector<1x8x8xbf16>, vector<1x16x8xbf16>, vector<1x8x16xf32> -> vector<1x8x16xf32>
    "tpu.trace_stop"() : () -> ()
    %cst_42 = arith.constant dense<0xFF800000> : vector<1x8xf32>
    %152 = vector.multi_reduction <maximumf>, %151, %cst_42 [2] : vector<1x8x16xf32> to vector<1x8xf32>
    %153 = vector.shape_cast %152 : vector<1x8xf32> to vector<1x8x1xf32>
    %154 = vector.broadcast %153 : vector<1x8x1xf32> to vector<1x8x16xf32>
    %155 = arith.subf %151, %154 : vector<1x8x16xf32>
    %156 = math.exp %155 : vector<1x8x16xf32>
    %cst_43 = arith.constant dense<0.000000e+00> : vector<1x8xf32>
    %157 = vector.multi_reduction <add>, %156, %cst_43 [2] : vector<1x8x16xf32> to vector<1x8xf32>
    %158 = vector.shape_cast %157 : vector<1x8xf32> to vector<1x8x1xf32>
    %159 = tpu.reciprocal %158 {approx = true} : vector<1x8x1xf32> -> vector<1x8x1xf32>
    %160 = vector.broadcast %159 : vector<1x8x1xf32> to vector<1x8x16xf32>
    %161 = arith.mulf %156, %160 : vector<1x8x16xf32>
    %162 = arith.truncf %161 : vector<1x8x16xf32> to vector<1x8x16xbf16>
    "tpu.trace_start"() <{level = 10 : i32, message = "bqk,bkd->bqd"}> : () -> ()
    %cst_44 = arith.constant dense<0.000000e+00> : vector<1x8x8xf32>
    %163 = tpu.matmul %162, %150, %cst_44 {dimension_numbers = #tpu.dot_dimension_numbers<[2], [1], [1], [2], [0, 0, 0, 1, 1, 2], [0], [0]>} : vector<1x8x16xbf16>, vector<1x16x8xbf16>, vector<1x8x8xf32> -> vector<1x8x8xf32>
    "tpu.trace_stop"() : () -> ()
    %164 = vector.extract_strided_slice %142 {offsets = [0, 8], sizes = [8, 8], strides = [1, 1]} : vector<8x32xbf16> to vector<8x8xbf16>
    %165 = vector.shape_cast %164 : vector<8x8xbf16> to vector<1x8x8xbf16>
    %166 = vector.extract_strided_slice %143 {offsets = [0, 8], sizes = [16, 8], strides = [1, 1]} : vector<16x32xbf16> to vector<16x8xbf16>
    %167 = vector.shape_cast %166 : vector<16x8xbf16> to vector<1x16x8xbf16>
    %168 = vector.extract_strided_slice %144 {offsets = [0, 8], sizes = [16, 8], strides = [1, 1]} : vector<16x32xbf16> to vector<16x8xbf16>
    %169 = vector.shape_cast %168 : vector<16x8xbf16> to vector<1x16x8xbf16>
    "tpu.trace_start"() <{level = 10 : i32, message = "bqd,bkd->bqk"}> : () -> ()
    %cst_45 = arith.constant dense<0.000000e+00> : vector<1x8x16xf32>
    %170 = tpu.matmul %165, %167, %cst_45 {dimension_numbers = #tpu.dot_dimension_numbers<[2], [2], [1], [1], [0, 0, 0, 1, 1, 1], [0], [0]>} : vector<1x8x8xbf16>, vector<1x16x8xbf16>, vector<1x8x16xf32> -> vector<1x8x16xf32>
    "tpu.trace_stop"() : () -> ()
    %cst_46 = arith.constant dense<0xFF800000> : vector<1x8xf32>
    %171 = vector.multi_reduction <maximumf>, %170, %cst_46 [2] : vector<1x8x16xf32> to vector<1x8xf32>
    %172 = vector.shape_cast %171 : vector<1x8xf32> to vector<1x8x1xf32>
    %173 = vector.broadcast %172 : vector<1x8x1xf32> to vector<1x8x16xf32>
    %174 = arith.subf %170, %173 : vector<1x8x16xf32>
    %175 = math.exp %174 : vector<1x8x16xf32>
    %cst_47 = arith.constant dense<0.000000e+00> : vector<1x8xf32>
    %176 = vector.multi_reduction <add>, %175, %cst_47 [2] : vector<1x8x16xf32> to vector<1x8xf32>
    %177 = vector.shape_cast %176 : vector<1x8xf32> to vector<1x8x1xf32>
    %178 = tpu.reciprocal %177 {approx = true} : vector<1x8x1xf32> -> vector<1x8x1xf32>
    %179 = vector.broadcast %178 : vector<1x8x1xf32> to vector<1x8x16xf32>
    %180 = arith.mulf %175, %179 : vector<1x8x16xf32>
    %181 = arith.truncf %180 : vector<1x8x16xf32> to vector<1x8x16xbf16>
    "tpu.trace_start"() <{level = 10 : i32, message = "bqk,bkd->bqd"}> : () -> ()
    %cst_48 = arith.constant dense<0.000000e+00> : vector<1x8x8xf32>
    %182 = tpu.matmul %181, %169, %cst_48 {dimension_numbers = #tpu.dot_dimension_numbers<[2], [1], [1], [2], [0, 0, 0, 1, 1, 2], [0], [0]>} : vector<1x8x16xbf16>, vector<1x16x8xbf16>, vector<1x8x8xf32> -> vector<1x8x8xf32>
    "tpu.trace_stop"() : () -> ()
    %183 = vector.extract_strided_slice %142 {offsets = [0, 16], sizes = [8, 8], strides = [1, 1]} : vector<8x32xbf16> to vector<8x8xbf16>
    %184 = vector.shape_cast %183 : vector<8x8xbf16> to vector<1x8x8xbf16>
    %185 = vector.extract_strided_slice %143 {offsets = [0, 16], sizes = [16, 8], strides = [1, 1]} : vector<16x32xbf16> to vector<16x8xbf16>
    %186 = vector.shape_cast %185 : vector<16x8xbf16> to vector<1x16x8xbf16>
    %187 = vector.extract_strided_slice %144 {offsets = [0, 16], sizes = [16, 8], strides = [1, 1]} : vector<16x32xbf16> to vector<16x8xbf16>
    %188 = vector.shape_cast %187 : vector<16x8xbf16> to vector<1x16x8xbf16>
    "tpu.trace_start"() <{level = 10 : i32, message = "bqd,bkd->bqk"}> : () -> ()
    %cst_49 = arith.constant dense<0.000000e+00> : vector<1x8x16xf32>
    %189 = tpu.matmul %184, %186, %cst_49 {dimension_numbers = #tpu.dot_dimension_numbers<[2], [2], [1], [1], [0, 0, 0, 1, 1, 1], [0], [0]>} : vector<1x8x8xbf16>, vector<1x16x8xbf16>, vector<1x8x16xf32> -> vector<1x8x16xf32>
    "tpu.trace_stop"() : () -> ()
    %cst_50 = arith.constant dense<0xFF800000> : vector<1x8xf32>
    %190 = vector.multi_reduction <maximumf>, %189, %cst_50 [2] : vector<1x8x16xf32> to vector<1x8xf32>
    %191 = vector.shape_cast %190 : vector<1x8xf32> to vector<1x8x1xf32>
    %192 = vector.broadcast %191 : vector<1x8x1xf32> to vector<1x8x16xf32>
    %193 = arith.subf %189, %192 : vector<1x8x16xf32>
    %194 = math.exp %193 : vector<1x8x16xf32>
    %cst_51 = arith.constant dense<0.000000e+00> : vector<1x8xf32>
    %195 = vector.multi_reduction <add>, %194, %cst_51 [2] : vector<1x8x16xf32> to vector<1x8xf32>
    %196 = vector.shape_cast %195 : vector<1x8xf32> to vector<1x8x1xf32>
    %197 = tpu.reciprocal %196 {approx = true} : vector<1x8x1xf32> -> vector<1x8x1xf32>
    %198 = vector.broadcast %197 : vector<1x8x1xf32> to vector<1x8x16xf32>
    %199 = arith.mulf %194, %198 : vector<1x8x16xf32>
    %200 = arith.truncf %199 : vector<1x8x16xf32> to vector<1x8x16xbf16>
    "tpu.trace_start"() <{level = 10 : i32, message = "bqk,bkd->bqd"}> : () -> ()
    %cst_52 = arith.constant dense<0.000000e+00> : vector<1x8x8xf32>
    %201 = tpu.matmul %200, %188, %cst_52 {dimension_numbers = #tpu.dot_dimension_numbers<[2], [1], [1], [2], [0, 0, 0, 1, 1, 2], [0], [0]>} : vector<1x8x16xbf16>, vector<1x16x8xbf16>, vector<1x8x8xf32> -> vector<1x8x8xf32>
    "tpu.trace_stop"() : () -> ()
    %202 = vector.extract_strided_slice %142 {offsets = [0, 24], sizes = [8, 8], strides = [1, 1]} : vector<8x32xbf16> to vector<8x8xbf16>
    %203 = vector.shape_cast %202 : vector<8x8xbf16> to vector<1x8x8xbf16>
    %204 = vector.extract_strided_slice %143 {offsets = [0, 24], sizes = [16, 8], strides = [1, 1]} : vector<16x32xbf16> to vector<16x8xbf16>
    %205 = vector.shape_cast %204 : vector<16x8xbf16> to vector<1x16x8xbf16>
    %206 = vector.extract_strided_slice %144 {offsets = [0, 24], sizes = [16, 8], strides = [1, 1]} : vector<16x32xbf16> to vector<16x8xbf16>
    %207 = vector.shape_cast %206 : vector<16x8xbf16> to vector<1x16x8xbf16>
    "tpu.trace_start"() <{level = 10 : i32, message = "bqd,bkd->bqk"}> : () -> ()
    %cst_53 = arith.constant dense<0.000000e+00> : vector<1x8x16xf32>
    %208 = tpu.matmul %203, %205, %cst_53 {dimension_numbers = #tpu.dot_dimension_numbers<[2], [2], [1], [1], [0, 0, 0, 1, 1, 1], [0], [0]>} : vector<1x8x8xbf16>, vector<1x16x8xbf16>, vector<1x8x16xf32> -> vector<1x8x16xf32>
    "tpu.trace_stop"() : () -> ()
    %cst_54 = arith.constant dense<0xFF800000> : vector<1x8xf32>
    %209 = vector.multi_reduction <maximumf>, %208, %cst_54 [2] : vector<1x8x16xf32> to vector<1x8xf32>
    %210 = vector.shape_cast %209 : vector<1x8xf32> to vector<1x8x1xf32>
    %211 = vector.broadcast %210 : vector<1x8x1xf32> to vector<1x8x16xf32>
    %212 = arith.subf %208, %211 : vector<1x8x16xf32>
    %213 = math.exp %212 : vector<1x8x16xf32>
    %cst_55 = arith.constant dense<0.000000e+00> : vector<1x8xf32>
    %214 = vector.multi_reduction <add>, %213, %cst_55 [2] : vector<1x8x16xf32> to vector<1x8xf32>
    %215 = vector.shape_cast %214 : vector<1x8xf32> to vector<1x8x1xf32>
    %216 = tpu.reciprocal %215 {approx = true} : vector<1x8x1xf32> -> vector<1x8x1xf32>
    %217 = vector.broadcast %216 : vector<1x8x1xf32> to vector<1x8x16xf32>
    %218 = arith.mulf %213, %217 : vector<1x8x16xf32>
    %219 = arith.truncf %218 : vector<1x8x16xf32> to vector<1x8x16xbf16>
    "tpu.trace_start"() <{level = 10 : i32, message = "bqk,bkd->bqd"}> : () -> ()
    %cst_56 = arith.constant dense<0.000000e+00> : vector<1x8x8xf32>
    %220 = tpu.matmul %219, %207, %cst_56 {dimension_numbers = #tpu.dot_dimension_numbers<[2], [1], [1], [2], [0, 0, 0, 1, 1, 2], [0], [0]>} : vector<1x8x16xbf16>, vector<1x16x8xbf16>, vector<1x8x8xf32> -> vector<1x8x8xf32>
    "tpu.trace_stop"() : () -> ()
    %221 = tpu.concatenate %163, %182, %201, %220 in 2 : vector<1x8x8xf32>, vector<1x8x8xf32>, vector<1x8x8xf32>, vector<1x8x8xf32> -> vector<1x8x32xf32>
    %222 = vector.shape_cast %221 : vector<1x8x32xf32> to vector<8x32xf32>
    %223 = arith.truncf %222 : vector<8x32xf32> to vector<8x32xbf16>
    %c0_57 = arith.constant 0 : index
    %c0_58 = arith.constant 0 : index
    %224 = vector.load %arg7[%c0_57, %c0_58] : memref<32x32xbf16, #tpu.memory_space<vmem>>, vector<32x32xbf16>
    %cst_59 = arith.constant dense<0.000000e+00> : vector<8x32xf32>
    %225 = tpu.matmul %223, %224, %cst_59 {dimension_numbers = #tpu.dot_dimension_numbers<[1], [0], [0], [1], [0, 0, 1, 1], [], []>} : vector<8x32xbf16>, vector<32x32xbf16>, vector<8x32xf32> -> vector<8x32xf32>
    %226 = vector.broadcast %5 : vector<1x32xf32> to vector<8x32xf32>
    %227 = arith.addf %225, %226 : vector<8x32xf32>
    %228 = arith.addf %128, %227 : vector<8x32xf32>
    %cst_60 = arith.constant dense<0.000000e+00> : vector<8xf32>
    %229 = vector.multi_reduction <add>, %228, %cst_60 [1] : vector<8x32xf32> to vector<8xf32>
    %230 = vector.shape_cast %229 : vector<8xf32> to vector<8x1xf32>
    %cst_61 = arith.constant 3.200000e+01 : f32
    %231 = vector.broadcast %cst_61 : f32 to vector<8x1xf32>
    %232 = arith.divf %230, %231 : vector<8x1xf32>
    %233 = arith.mulf %228, %228 : vector<8x32xf32>
    %cst_62 = arith.constant dense<0.000000e+00> : vector<8xf32>
    %234 = vector.multi_reduction <add>, %233, %cst_62 [1] : vector<8x32xf32> to vector<8xf32>
    %235 = vector.shape_cast %234 : vector<8xf32> to vector<8x1xf32>
    %cst_63 = arith.constant 3.200000e+01 : f32
    %236 = vector.broadcast %cst_63 : f32 to vector<8x1xf32>
    %237 = arith.divf %235, %236 : vector<8x1xf32>
    %238 = arith.mulf %232, %232 : vector<8x1xf32>
    %239 = arith.subf %237, %238 : vector<8x1xf32>
    %240 = vector.broadcast %232 : vector<8x1xf32> to vector<8x32xf32>
    %241 = arith.subf %228, %240 : vector<8x32xf32>
    %cst_64 = arith.constant 9.99999974E-6 : f32
    %242 = vector.broadcast %cst_64 : f32 to vector<8x1xf32>
    %243 = arith.addf %239, %242 : vector<8x1xf32>
    %244 = math.rsqrt %243 : vector<8x1xf32>
    %245 = vector.broadcast %244 : vector<8x1xf32> to vector<8x32xf32>
    %246 = arith.mulf %241, %245 : vector<8x32xf32>
    %247 = vector.extract_strided_slice %7 {offsets = [1, 0], sizes = [1, 32], strides = [1, 1]} : vector<3x32xf32> to vector<1x32xf32>
    %248 = vector.broadcast %247 : vector<1x32xf32> to vector<8x32xf32>
    %249 = arith.mulf %246, %248 : vector<8x32xf32>
    %250 = vector.extract_strided_slice %8 {offsets = [1, 0], sizes = [1, 32], strides = [1, 1]} : vector<3x32xf32> to vector<1x32xf32>
    %251 = vector.broadcast %250 : vector<1x32xf32> to vector<8x32xf32>
    %252 = arith.addf %249, %251 : vector<8x32xf32>
    %253 = arith.truncf %252 : vector<8x32xf32> to vector<8x32xbf16>
    %c0_65 = arith.constant 0 : index
    %c0_66 = arith.constant 0 : index
    %254 = vector.load %arg8[%c0_65, %c0_66] : memref<32x64xbf16, #tpu.memory_space<vmem>>, vector<32x64xbf16>
    %cst_67 = arith.constant dense<0.000000e+00> : vector<8x64xf32>
    %255 = tpu.matmul %253, %254, %cst_67 {dimension_numbers = #tpu.dot_dimension_numbers<[1], [0], [0], [1], [0, 0, 1, 1], [], []>} : vector<8x32xbf16>, vector<32x64xbf16>, vector<8x64xf32> -> vector<8x64xf32>
    %c0_68 = arith.constant 0 : index
    %c0_69 = arith.constant 0 : index
    %256 = vector.load %arg12[%c0_68, %c0_69] : memref<1x64xf32, #tpu.memory_space<vmem>>, vector<1x64xf32>
    %257 = vector.broadcast %256 : vector<1x64xf32> to vector<8x64xf32>
    %258 = arith.addf %255, %257 : vector<8x64xf32>
    %cst_70 = arith.constant 0.000000e+00 : f32
    %259 = vector.broadcast %cst_70 : f32 to vector<8x64xf32>
    %260 = arith.maximumf %258, %259 : vector<8x64xf32>
    %261 = arith.truncf %260 : vector<8x64xf32> to vector<8x64xbf16>
    %c0_71 = arith.constant 0 : index
    %c0_72 = arith.constant 0 : index
    %262 = vector.load %arg9[%c0_71, %c0_72] : memref<64x32xbf16, #tpu.memory_space<vmem>>, vector<64x32xbf16>
    %cst_73 = arith.constant dense<0.000000e+00> : vector<8x32xf32>
    %263 = tpu.matmul %261, %262, %cst_73 {dimension_numbers = #tpu.dot_dimension_numbers<[1], [0], [0], [1], [0, 0, 1, 1], [], []>} : vector<8x64xbf16>, vector<64x32xbf16>, vector<8x32xf32> -> vector<8x32xf32>
    %264 = vector.broadcast %6 : vector<1x32xf32> to vector<8x32xf32>
    %265 = arith.addf %263, %264 : vector<8x32xf32>
    %266 = arith.addf %252, %265 : vector<8x32xf32>
    %cst_74 = arith.constant dense<0.000000e+00> : vector<8xf32>
    %267 = vector.multi_reduction <add>, %266, %cst_74 [1] : vector<8x32xf32> to vector<8xf32>
    %268 = vector.shape_cast %267 : vector<8xf32> to vector<8x1xf32>
    %cst_75 = arith.constant 3.200000e+01 : f32
    %269 = vector.broadcast %cst_75 : f32 to vector<8x1xf32>
    %270 = arith.divf %268, %269 : vector<8x1xf32>
    %271 = arith.mulf %266, %266 : vector<8x32xf32>
    %cst_76 = arith.constant dense<0.000000e+00> : vector<8xf32>
    %272 = vector.multi_reduction <add>, %271, %cst_76 [1] : vector<8x32xf32> to vector<8xf32>
    %273 = vector.shape_cast %272 : vector<8xf32> to vector<8x1xf32>
    %cst_77 = arith.constant 3.200000e+01 : f32
    %274 = vector.broadcast %cst_77 : f32 to vector<8x1xf32>
    %275 = arith.divf %273, %274 : vector<8x1xf32>
    %276 = arith.mulf %270, %270 : vector<8x1xf32>
    %277 = arith.subf %275, %276 : vector<8x1xf32>
    %278 = vector.broadcast %270 : vector<8x1xf32> to vector<8x32xf32>
    %279 = arith.subf %266, %278 : vector<8x32xf32>
    %cst_78 = arith.constant 9.99999974E-6 : f32
    %280 = vector.broadcast %cst_78 : f32 to vector<8x1xf32>
    %281 = arith.addf %277, %280 : vector<8x1xf32>
    %282 = math.rsqrt %281 : vector<8x1xf32>
    %283 = vector.broadcast %282 : vector<8x1xf32> to vector<8x32xf32>
    %284 = arith.mulf %279, %283 : vector<8x32xf32>
    %285 = vector.extract_strided_slice %7 {offsets = [2, 0], sizes = [1, 32], strides = [1, 1]} : vector<3x32xf32> to vector<1x32xf32>
    %286 = vector.broadcast %285 : vector<1x32xf32> to vector<8x32xf32>
    %287 = arith.mulf %284, %286 : vector<8x32xf32>
    %288 = vector.extract_strided_slice %8 {offsets = [2, 0], sizes = [1, 32], strides = [1, 1]} : vector<3x32xf32> to vector<1x32xf32>
    %289 = vector.broadcast %288 : vector<1x32xf32> to vector<8x32xf32>
    %290 = arith.addf %287, %289 : vector<8x32xf32>
    %c0_79 = arith.constant 0 : index
    %c0_80 = arith.constant 0 : index
    %291 = vector.load %arg14[%c0_79, %c0_80] : memref<8x32xf32, #tpu.memory_space<vmem>>, vector<8x32xf32>
    tpu.vector_store %arg14[%c0_79, %c0_80], %290 {strides = array<i32>} : memref<8x32xf32, #tpu.memory_space<vmem>>, vector<8x32xf32>,
    return
  }
  func.func @transform_0(%arg0: i32) -> (i32, i32) {
    %c0_i32 = arith.constant 0 : i32
    %c0_i32_0 = arith.constant 0 : i32
    return %arg0, %c0_i32 : i32, i32
  }
  func.func @transform_1(%arg0: i32) -> (i32, i32) {
    %c0_i32 = arith.constant 0 : i32
    %c0_i32_0 = arith.constant 0 : i32
    return %arg0, %c0_i32 : i32, i32
  }
  func.func @transform_2(%arg0: i32) -> (i32, i32) {
    %c0_i32 = arith.constant 0 : i32
    %c0_i32_0 = arith.constant 0 : i32
    %c0_i32_1 = arith.constant 0 : i32
    return %c0_i32, %c0_i32_0 : i32, i32
  }
  func.func @transform_3(%arg0: i32) -> (i32, i32) {
    %c0_i32 = arith.constant 0 : i32
    %c0_i32_0 = arith.constant 0 : i32
    %c0_i32_1 = arith.constant 0 : i32
    return %c0_i32, %c0_i32_0 : i32, i32
  }
  func.func @transform_4(%arg0: i32) -> (i32, i32) {
    %c0_i32 = arith.constant 0 : i32
    %c0_i32_0 = arith.constant 0 : i32
    %c0_i32_1 = arith.constant 0 : i32
    return %c0_i32, %c0_i32_0 : i32, i32
  }
  func.func @transform_5(%arg0: i32) -> (i32, i32) {
    %c0_i32 = arith.constant 0 : i32
    %c0_i32_0 = arith.constant 0 : i32
    %c0_i32_1 = arith.constant 0 : i32
    return %c0_i32, %c0_i32_0 : i32, i32
  }
  func.func @transform_6(%arg0: i32) -> (i32, i32) {
    %c0_i32 = arith.constant 0 : i32
    %c0_i32_0 = arith.constant 0 : i32
    %c0_i32_1 = arith.constant 0 : i32
    return %c0_i32, %c0_i32_0 : i32, i32
  }
  func.func @transform_7(%arg0: i32) -> (i32, i32) {
    %c0_i32 = arith.constant 0 : i32
    %c0_i32_0 = arith.constant 0 : i32
    %c0_i32_1 = arith.constant 0 : i32
    return %c0_i32, %c0_i32_0 : i32, i32
  }
  func.func @transform_8(%arg0: i32) -> (i32, i32) {
    %c0_i32 = arith.constant 0 : i32
    %c0_i32_0 = arith.constant 0 : i32
    %c0_i32_1 = arith.constant 0 : i32
    return %c0_i32, %c0_i32_0 : i32, i32
  }
  func.func @transform_9(%arg0: i32) -> (i32, i32) {
    %c0_i32 = arith.constant 0 : i32
    %c0_i32_0 = arith.constant 0 : i32
    %c0_i32_1 = arith.constant 0 : i32
    return %c0_i32, %c0_i32_0 : i32, i32
  }
  func.func @transform_10(%arg0: i32) -> (i32, i32) {
    %c0_i32 = arith.constant 0 : i32
    %c0_i32_0 = arith.constant 0 : i32
    %c0_i32_1 = arith.constant 0 : i32
    return %c0_i32, %c0_i32_0 : i32, i32
  }
  func.func @transform_11(%arg0: i32) -> (i32, i32) {
    %c0_i32 = arith.constant 0 : i32
    %c0_i32_0 = arith.constant 0 : i32
    %c0_i32_1 = arith.constant 0 : i32
    return %c0_i32, %c0_i32_0 : i32, i32
  }
  func.func @transform_12(%arg0: i32) -> (i32, i32) {
    %c0_i32 = arith.constant 0 : i32
    %c0_i32_0 = arith.constant 0 : i32
    %c0_i32_1 = arith.constant 0 : i32
    return %c0_i32, %c0_i32_0 : i32, i32
  }
  func.func @transform_13(%arg0: i32) -> (i32, i32) {
    %c0_i32 = arith.constant 0 : i32
    %c0_i32_0 = arith.constant 0 : i32
    return %arg0, %c0_i32 : i32, i32
  }
}

</mosaic_0001>

<llo_original>
// kernel: tpu_custom_call.1
$region0: #{tpu_custom_call.1}
  #allocation0 [shape = 'u32[]', space=smem, size = 0x4, offset = 0x4, fixed_abs, tag = 'smem constant byte address 0x4 - core index']
  #allocation1 [shape = 'u32[144,128]{1,0:T(1,128)}', space=vmem, size = 0x12000, scoped, tag = 'internal scratch']
  %s0 = inlined_call_operand.vmem [shape: f32[16,32], index: 0, kind: input, shape index: {}]
  %s1 = inlined_call_operand.vmem [shape: f32[32,32], index: 1, kind: input, shape index: {}]
  %s2 = inlined_call_operand.hbm [shape: bf16[32,96], index: 2, kind: input, shape index: {}]
  %s3 = inlined_call_operand.hbm [shape: bf16[32,32], index: 3, kind: input, shape index: {}]
  %s4 = inlined_call_operand.hbm [shape: bf16[32,32], index: 4, kind: input, shape index: {}]
  %s5 = inlined_call_operand.hbm [shape: bf16[32,64], index: 5, kind: input, shape index: {}]
  %s6 = inlined_call_operand.hbm [shape: bf16[32,32], index: 6, kind: input, shape index: {}]
  %s7 = inlined_call_operand.hbm [shape: bf16[32,64], index: 7, kind: input, shape index: {}]
  %s8 = inlined_call_operand.vmem [shape: bf16[64,32], index: 8, kind: input, shape index: {}]
  %s9 = inlined_call_operand.vmem [shape: f32[1,96], index: 9, kind: input, shape index: {}]
  %s10 = inlined_call_operand.vmem [shape: f32[1,64], index: 10, kind: input, shape index: {}]
  %s11 = inlined_call_operand.vmem [shape: f32[1,64], index: 11, kind: input, shape index: {}]
  %s12 = inlined_call_operand.vmem [shape: f32[10,32], index: 12, kind: input, shape index: {}]
  %s13 = inlined_call_operand.hbm [shape: f32[16,32], index: 13, kind: output, shape index: {}]
  %s14 = sld [smem:[#allocation0]]
  $region109: #{tpu_custom_call.1} parent=0
    _
  %s16 = ssub.s32 1, %s14
  %s17 = scalar_select 0, %s16, %s14
  $region1: #{tpu_custom_call.1} parent=0
    #allocation2 [shape = 'u8[8192]{0}', space=vmem, size = 0x2000, scoped, tag = 'input window, operand 2, single buffered']
    #allocation3 [shape = 's32[2]{0}', space=sflag, size = 0x8, scoped, tag = 'scoped memory for tpu_custom_call.1']
    #allocation4 [shape = 's32[2]{0}', space=sflag, size = 0x8, scoped, tag = 'scoped memory for tpu_custom_call.1']
    #allocation5 [shape = 'u8[8192]{0}', space=vmem, size = 0x2000, scoped, tag = 'input window, operand 3, single buffered']
    #allocation6 [shape = 's32[1]{0}', space=sflag, size = 0x4, scoped, tag = 'scoped memory for tpu_custom_call.1']
    #allocation7 [shape = 'u8[8192]{0}', space=vmem, size = 0x2000, scoped, tag = 'input window, operand 4, single buffered']
    #allocation8 [shape = 'u8[8192]{0}', space=vmem, size = 0x2000, scoped, tag = 'input window, operand 5, single buffered']
    #allocation9 [shape = 's32[1]{0}', space=sflag, size = 0x4, scoped, tag = 'scoped memory for tpu_custom_call.1']
    #allocation10 [shape = 'u8[8192]{0}', space=vmem, size = 0x2000, scoped, tag = 'input window, operand 6, single buffered']
    #allocation11 [shape = 'u8[8192]{0}', space=vmem, size = 0x2000, scoped, tag = 'input window, operand 7, single buffered']
    #allocation12 [shape = 's32[1]{0}', space=sflag, size = 0x4, scoped, tag = 'scoped memory for tpu_custom_call.1']
    #allocation13 [shape = 'u8[8192]{0}', space=vmem, size = 0x2000, scoped, tag = 'output window, operand 0']
    %18 = vsyncpa [#allocation3], 0
    %19 = vsyncpa [#allocation6], 0
    %20 = vsyncpa [#allocation9], 0
    %21 = vsyncpa [#allocation12], 0
    %22 = vsyncpa [#allocation4], 0
    %s23 = scalar_lea.sflag [#allocation4], 1
    %24 = vsyncpa %s23, 0
    loop: start=0, step=1, limit=4
    $region2: #{tpu_custom_call.1} parent=1 // loop_pre_header
      _
    $region3: #{tpu_custom_call.1} parent=1 // loop_header
      %s26 = sphi 0, %s30
      %p27 = scmp.ge.s32.totalorder %s26, 4
      %s36 = sphi 0, %s38
      %s39 = sphi 0, %s36
      %s40 = sphi 0, %s39
      %s56 = sphi 0, %s40
      %s62 = sphi 0, %s64
      %s65 = sphi 0, %s62
      %s66 = sphi 0, %s65
      %s82 = sphi 0, %s66
      %s86 = sphi 0, %s86
      %s88 = sphi 0, %s86
      %s89 = sphi 0, %s88
      %s103 = sphi 0, %s89
      %s107 = sphi 0, %s107
      %s109 = sphi 0, %s107
      %s110 = sphi 0, %s109
      %s124 = sphi 0, %s110
      %s128 = sphi 0, %s128
      %s130 = sphi 0, %s128
      %s131 = sphi 0, %s130
      %s145 = sphi 0, %s131
      %s149 = sphi 0, %s149
      %s151 = sphi 0, %s149
      %s152 = sphi 0, %s151
      %s166 = sphi 0, %s152
      %s170 = sphi 0, %s170
      %s172 = sphi 0, %s170
      %s173 = sphi 0, %s172
      %s187 = sphi 0, %s173
      %s191 = sphi 0, %s191
      %s193 = sphi 0, %s191
      %s194 = sphi 0, %s193
      %s208 = sphi 0, %s194
      %s212 = sphi 0, %s212
      %s214 = sphi 0, %s212
      %s215 = sphi 0, %s214
      %s229 = sphi 0, %s215
      %s233 = sphi 0, %s233
      %s235 = sphi 0, %s233
      %s236 = sphi 0, %s235
      %s250 = sphi 0, %s236
      %s254 = sphi 0, %s254
      %s256 = sphi 0, %s254
      %s257 = sphi 0, %s256
      %s271 = sphi 0, %s257
      %s275 = sphi 0, %s275
      %s277 = sphi 0, %s275
      %s278 = sphi 0, %s277
      %s292 = sphi 0, %s278
      %s296 = sphi 0, %s296
      %s298 = sphi 0, %s296
      %s299 = sphi 0, %s298
      %s313 = sphi 0, %s299
      %s319 = sphi 0, %s321
      %s322 = sphi 0, %s319
      %s323 = sphi 0, %s322
      %s339 = sphi 0, %s323
    $region4: #{tpu_custom_call.1} parent=1 // loop_header_branch
      %29 = sbr.rel (%p27) target = $region8
    $region5: #{tpu_custom_call.1} parent=1 // loop_body
      %s31 = ssub.s32 %s26, 1
      %s32 = ssub.s32 %s26, 2
      %s33 = sadd.s32 %s26, 1
      %s34 = ssub.s32 %s26, %s33
      %p35 = scmp.eq.s32.totalorder %s34, 0
      %s37 = sadd.s32 %s36, 1
      %s38 = scalar_select %p35, %s36, %s37
      %p41 = pneg %p35
      %p42 = scmp.eq.s32.totalorder %s26, 1
      %p43 = por %p41, %p42
      %p44 = scmp.ne.s32.totalorder %s36, %s39
      %p45 = scmp.eq.s32.totalorder %s26, 0
      %p46 = por %p44, %p45
      %p47 = scmp.ne.s32.totalorder %s36, %s39
      %p48 = scmp.eq.s32.totalorder %s31, 1
      %p49 = por %p47, %p48
      %p50 = scmp.ne.s32.totalorder %s39, %s40
      %p51 = scmp.eq.s32.totalorder %s31, 0
      %p52 = por %p50, %p51
      %p53 = scmp.ne.s32.totalorder %s39, %s40
      %p54 = scmp.eq.s32.totalorder %s32, 1
      %p55 = por %p53, %p54
      %p57 = scmp.ne.s32.totalorder %s40, %s56
      %p58 = scmp.eq.s32.totalorder %s32, 0
      %p59 = por %p57, %p58
      %s60 = ssub.s32 %s26, %s33
      %p61 = scmp.eq.s32.totalorder %s60, 0
      %s63 = sadd.s32 %s62, 1
      %s64 = scalar_select %p61, %s62, %s63
      %p67 = pneg %p61
      %p68 = scmp.eq.s32.totalorder %s26, 1
      %p69 = por %p67, %p68
      %p70 = scmp.ne.s32.totalorder %s62, %s65
      %p71 = scmp.eq.s32.totalorder %s26, 0
      %p72 = por %p70, %p71
      %p73 = scmp.ne.s32.totalorder %s62, %s65
      %p74 = scmp.eq.s32.totalorder %s31, 1
      %p75 = por %p73, %p74
      %p76 = scmp.ne.s32.totalorder %s65, %s66
      %p77 = scmp.eq.s32.totalorder %s31, 0
      %p78 = por %p76, %p77
      %p79 = scmp.ne.s32.totalorder %s65, %s66
      %p80 = scmp.eq.s32.totalorder %s32, 1
      %p81 = por %p79, %p80
      %p83 = scmp.ne.s32.totalorder %s66, %s82
      %p84 = scmp.eq.s32.totalorder %s32, 0
      %p85 = por %p83, %p84
      %s87 = sadd.s32 %s86, 1
      %p90 = scmp.eq.s32.totalorder %s26, 1
      %p91 = scmp.ne.s32.totalorder %s86, %s88
      %p92 = scmp.eq.s32.totalorder %s26, 0
      %p93 = por %p91, %p92
      %p94 = scmp.ne.s32.totalorder %s86, %s88
      %p95 = scmp.eq.s32.totalorder %s31, 1
      %p96 = por %p94, %p95
      %p97 = scmp.ne.s32.totalorder %s88, %s89
      %p98 = scmp.eq.s32.totalorder %s31, 0
      %p99 = por %p97, %p98
      %p100 = scmp.ne.s32.totalorder %s88, %s89
      %p101 = scmp.eq.s32.totalorder %s32, 1
      %p102 = por %p100, %p101
      %p104 = scmp.ne.s32.totalorder %s89, %s103
      %p105 = scmp.eq.s32.totalorder %s32, 0
      %p106 = por %p104, %p105
      %s108 = sadd.s32 %s107, 1
      %p111 = scmp.eq.s32.totalorder %s26, 1
      %p112 = scmp.ne.s32.totalorder %s107, %s109
      %p113 = scmp.eq.s32.totalorder %s26, 0
      %p114 = por %p112, %p113
      %p115 = scmp.ne.s32.totalorder %s107, %s109
      %p116 = scmp.eq.s32.totalorder %s31, 1
      %p117 = por %p115, %p116
      %p118 = scmp.ne.s32.totalorder %s109, %s110
      %p119 = scmp.eq.s32.totalorder %s31, 0
      %p120 = por %p118, %p119
      %p121 = scmp.ne.s32.totalorder %s109, %s110
      %p122 = scmp.eq.s32.totalorder %s32, 1
      %p123 = por %p121, %p122
      %p125 = scmp.ne.s32.totalorder %s110, %s124
      %p126 = scmp.eq.s32.totalorder %s32, 0
      %p127 = por %p125, %p126
      %s129 = sadd.s32 %s128, 1
      %p132 = scmp.eq.s32.totalorder %s26, 1
      %p133 = scmp.ne.s32.totalorder %s128, %s130
      %p134 = scmp.eq.s32.totalorder %s26, 0
      %p135 = por %p133, %p134
      %p136 = scmp.ne.s32.totalorder %s128, %s130
      %p137 = scmp.eq.s32.totalorder %s31, 1
      %p138 = por %p136, %p137
      %p139 = scmp.ne.s32.totalorder %s130, %s131
      %p140 = scmp.eq.s32.totalorder %s31, 0
      %p141 = por %p139, %p140
      %p142 = scmp.ne.s32.totalorder %s130, %s131
      %p143 = scmp.eq.s32.totalorder %s32, 1
      %p144 = por %p142, %p143
      %p146 = scmp.ne.s32.totalorder %s131, %s145
      %p147 = scmp.eq.s32.totalorder %s32, 0
      %p148 = por %p146, %p147
      %s150 = sadd.s32 %s149, 1
      %p153 = scmp.eq.s32.totalorder %s26, 1
      %p154 = scmp.ne.s32.totalorder %s149, %s151
      %p155 = scmp.eq.s32.totalorder %s26, 0
      %p156 = por %p154, %p155
      %p157 = scmp.ne.s32.totalorder %s149, %s151
      %p158 = scmp.eq.s32.totalorder %s31, 1
      %p159 = por %p157, %p158
      %p160 = scmp.ne.s32.totalorder %s151, %s152
      %p161 = scmp.eq.s32.totalorder %s31, 0
      %p162 = por %p160, %p161
      %p163 = scmp.ne.s32.totalorder %s151, %s152
      %p164 = scmp.eq.s32.totalorder %s32, 1
      %p165 = por %p163, %p164
      %p167 = scmp.ne.s32.totalorder %s152, %s166
      %p168 = scmp.eq.s32.totalorder %s32, 0
      %p169 = por %p167, %p168
      %s171 = sadd.s32 %s170, 1
      %p174 = scmp.eq.s32.totalorder %s26, 1
      %p175 = scmp.ne.s32.totalorder %s170, %s172
      %p176 = scmp.eq.s32.totalorder %s26, 0
      %p177 = por %p175, %p176
      %p178 = scmp.ne.s32.totalorder %s170, %s172
      %p179 = scmp.eq.s32.totalorder %s31, 1
      %p180 = por %p178, %p179
      %p181 = scmp.ne.s32.totalorder %s172, %s173
      %p182 = scmp.eq.s32.totalorder %s31, 0
      %p183 = por %p181, %p182
      %p184 = scmp.ne.s32.totalorder %s172, %s173
      %p185 = scmp.eq.s32.totalorder %s32, 1
      %p186 = por %p184, %p185
      %p188 = scmp.ne.s32.totalorder %s173, %s187
      %p189 = scmp.eq.s32.totalorder %s32, 0
      %p190 = por %p188, %p189
      %s192 = sadd.s32 %s191, 1
      %p195 = scmp.eq.s32.totalorder %s26, 1
      %p196 = scmp.ne.s32.totalorder %s191, %s193
      %p197 = scmp.eq.s32.totalorder %s26, 0
      %p198 = por %p196, %p197
      %p199 = scmp.ne.s32.totalorder %s191, %s193
      %p200 = scmp.eq.s32.totalorder %s31, 1
      %p201 = por %p199, %p200
      %p202 = scmp.ne.s32.totalorder %s193, %s194
      %p203 = scmp.eq.s32.totalorder %s31, 0
      %p204 = por %p202, %p203
      %p205 = scmp.ne.s32.totalorder %s193, %s194
      %p206 = scmp.eq.s32.totalorder %s32, 1
      %p207 = por %p205, %p206
      %p209 = scmp.ne.s32.totalorder %s194, %s208
      %p210 = scmp.eq.s32.totalorder %s32, 0
      %p211 = por %p209, %p210
      %s213 = sadd.s32 %s212, 1
      %p216 = scmp.eq.s32.totalorder %s26, 1
      %p217 = scmp.ne.s32.totalorder %s212, %s214
      %p218 = scmp.eq.s32.totalorder %s26, 0
      %p219 = por %p217, %p218
      %p220 = scmp.ne.s32.totalorder %s212, %s214
      %p221 = scmp.eq.s32.totalorder %s31, 1
      %p222 = por %p220, %p221
      %p223 = scmp.ne.s32.totalorder %s214, %s215
      %p224 = scmp.eq.s32.totalorder %s31, 0
      %p225 = por %p223, %p224
      %p226 = scmp.ne.s32.totalorder %s214, %s215
      %p227 = scmp.eq.s32.totalorder %s32, 1
      %p228 = por %p226, %p227
      %p230 = scmp.ne.s32.totalorder %s215, %s229
      %p231 = scmp.eq.s32.totalorder %s32, 0
      %p232 = por %p230, %p231
      %s234 = sadd.s32 %s233, 1
      %p237 = scmp.eq.s32.totalorder %s26, 1
      %p238 = scmp.ne.s32.totalorder %s233, %s235
      %p239 = scmp.eq.s32.totalorder %s26, 0
      %p240 = por %p238, %p239
      %p241 = scmp.ne.s32.totalorder %s233, %s235
      %p242 = scmp.eq.s32.totalorder %s31, 1
      %p243 = por %p241, %p242
      %p244 = scmp.ne.s32.totalorder %s235, %s236
      %p245 = scmp.eq.s32.totalorder %s31, 0
      %p246 = por %p244, %p245
      %p247 = scmp.ne.s32.totalorder %s235, %s236
      %p248 = scmp.eq.s32.totalorder %s32, 1
      %p249 = por %p247, %p248
      %p251 = scmp.ne.s32.totalorder %s236, %s250
      %p252 = scmp.eq.s32.totalorder %s32, 0
      %p253 = por %p251, %p252
      %s255 = sadd.s32 %s254, 1
      %p258 = scmp.eq.s32.totalorder %s26, 1
      %p259 = scmp.ne.s32.totalorder %s254, %s256
      %p260 = scmp.eq.s32.totalorder %s26, 0
      %p261 = por %p259, %p260
      %p262 = scmp.ne.s32.totalorder %s254, %s256
      %p263 = scmp.eq.s32.totalorder %s31, 1
      %p264 = por %p262, %p263
      %p265 = scmp.ne.s32.totalorder %s256, %s257
      %p266 = scmp.eq.s32.totalorder %s31, 0
      %p267 = por %p265, %p266
      %p268 = scmp.ne.s32.totalorder %s256, %s257
      %p269 = scmp.eq.s32.totalorder %s32, 1
      %p270 = por %p268, %p269
      %p272 = scmp.ne.s32.totalorder %s257, %s271
      %p273 = scmp.eq.s32.totalorder %s32, 0
      %p274 = por %p272, %p273
      %s276 = sadd.s32 %s275, 1
      %p279 = scmp.eq.s32.totalorder %s26, 1
      %p280 = scmp.ne.s32.totalorder %s275, %s277
      %p281 = scmp.eq.s32.totalorder %s26, 0
      %p282 = por %p280, %p281
      %p283 = scmp.ne.s32.totalorder %s275, %s277
      %p284 = scmp.eq.s32.totalorder %s31, 1
      %p285 = por %p283, %p284
      %p286 = scmp.ne.s32.totalorder %s277, %s278
      %p287 = scmp.eq.s32.totalorder %s31, 0
      %p288 = por %p286, %p287
      %p289 = scmp.ne.s32.totalorder %s277, %s278
      %p290 = scmp.eq.s32.totalorder %s32, 1
      %p291 = por %p289, %p290
      %p293 = scmp.ne.s32.totalorder %s278, %s292
      %p294 = scmp.eq.s32.totalorder %s32, 0
      %p295 = por %p293, %p294
      %s297 = sadd.s32 %s296, 1
      %p300 = scmp.eq.s32.totalorder %s26, 1
      %p301 = scmp.ne.s32.totalorder %s296, %s298
      %p302 = scmp.eq.s32.totalorder %s26, 0
      %p303 = por %p301, %p302
      %p304 = scmp.ne.s32.totalorder %s296, %s298
      %p305 = scmp.eq.s32.totalorder %s31, 1
      %p306 = por %p304, %p305
      %p307 = scmp.ne.s32.totalorder %s298, %s299
      %p308 = scmp.eq.s32.totalorder %s31, 0
      %p309 = por %p307, %p308
      %p310 = scmp.ne.s32.totalorder %s298, %s299
      %p311 = scmp.eq.s32.totalorder %s32, 1
      %p312 = por %p310, %p311
      %p314 = scmp.ne.s32.totalorder %s299, %s313
      %p315 = scmp.eq.s32.totalorder %s32, 0
      %p316 = por %p314, %p315
      %s317 = ssub.s32 %s26, %s33
      %p318 = scmp.eq.s32.totalorder %s317, 0
      %s320 = sadd.s32 %s319, 1
      %s321 = scalar_select %p318, %s319, %s320
      %p324 = pneg %p318
      %p325 = scmp.eq.s32.totalorder %s26, 1
      %p326 = por %p324, %p325
      %p327 = scmp.ne.s32.totalorder %s319, %s322
      %p328 = scmp.eq.s32.totalorder %s26, 0
      %p329 = por %p327, %p328
      %p330 = scmp.ne.s32.totalorder %s319, %s322
      %p331 = scmp.eq.s32.totalorder %s31, 1
      %p332 = por %p330, %p331
      %p333 = scmp.ne.s32.totalorder %s322, %s323
      %p334 = scmp.eq.s32.totalorder %s31, 0
      %p335 = por %p333, %p334
      %p336 = scmp.ne.s32.totalorder %s322, %s323
      %p337 = scmp.eq.s32.totalorder %s32, 1
      %p338 = por %p336, %p337
      %p340 = scmp.ne.s32.totalorder %s323, %s339
      %p341 = scmp.eq.s32.totalorder %s32, 0
      %p342 = por %p340, %p341
      %p343 = scmp.le.s32.totalorder 1, %s26
      %p344 = scmp.lt.s32.totalorder %s26, 3
      %p345 = pnand %p343, %p344
      %p346 = pneg %p345
      // Predicated region
      $region9: #{tpu_custom_call.1} parent=5 // pred_check
        _
      $region10: #{tpu_custom_call.1} parent=5 // pred_check_branch
        %348 = sbr.rel (%p345) target = $region12
      $region11: #{tpu_custom_call.1} parent=5 // pred_region
        %s349 = ssub.s32 %s26, 1
        // Predicated region
        $region13: #{tpu_custom_call.1} parent=11 // pred_check
          %p350 = pneg %p99
        $region14: #{tpu_custom_call.1} parent=11 // pred_check_branch
          %352 = sbr.rel (%p350) target = $region16
        $region15: #{tpu_custom_call.1} parent=11 // pred_region
          %s354 = ssub.s32 256, 256
          %355 = vsyncadd [#allocation3], %s354
          %s356 = sshll.u32 [#allocation2], 4
          %s357 = int_to_ptr.vmem [resolvable:$true] %s356
          %362 = dma.hbm_to_vmem [thread:$0]  %s2, 256, %s357, [#allocation3], 64, 64, 4
        $region16: #{tpu_custom_call.1} parent=11 // pred_fallthru
          _
        // Predicated region
        $region17: #{tpu_custom_call.1} parent=11 // pred_check
          %p363 = pneg %p120
        $region18: #{tpu_custom_call.1} parent=11 // pred_check_branch
          %365 = sbr.rel (%p363) target = $region20
        $region19: #{tpu_custom_call.1} parent=11 // pred_region
          %s367 = ssub.s32 256, 256
          %368 = vsyncadd [#allocation6], %s367
          %s369 = sshll.u32 [#allocation5], 4
          %s370 = int_to_ptr.vmem [resolvable:$true] %s369
          %375 = dma.hbm_to_vmem [thread:$0]  %s3, 256, %s370, [#allocation6], 64, 64, 4
        $region20: #{tpu_custom_call.1} parent=11 // pred_fallthru
          _
        // Predicated region
        $region21: #{tpu_custom_call.1} parent=11 // pred_check
          %p376 = pneg %p141
        $region22: #{tpu_custom_call.1} parent=11 // pred_check_branch
          %378 = sbr.rel (%p376) target = $region24
        $region23: #{tpu_custom_call.1} parent=11 // pred_region
          %s380 = ssub.s32 256, 256
          %381 = vsyncadd [#allocation6], %s380
          %s382 = sshll.u32 [#allocation7], 4
          %s383 = int_to_ptr.vmem [resolvable:$true] %s382
          %388 = dma.hbm_to_vmem [thread:$0]  %s4, 256, %s383, [#allocation6], 64, 64, 4
        $region24: #{tpu_custom_call.1} parent=11 // pred_fallthru
          _
        // Predicated region
        $region25: #{tpu_custom_call.1} parent=11 // pred_check
          %p389 = pneg %p162
        $region26: #{tpu_custom_call.1} parent=11 // pred_check_branch
          %391 = sbr.rel (%p389) target = $region28
        $region27: #{tpu_custom_call.1} parent=11 // pred_region
          %s393 = ssub.s32 256, 256
          %394 = vsyncadd [#allocation9], %s393
          %s395 = sshll.u32 [#allocation8], 4
          %s396 = int_to_ptr.vmem [resolvable:$true] %s395
          %401 = dma.hbm_to_vmem [thread:$0]  %s5, 256, %s396, [#allocation9], 64, 64, 4
        $region28: #{tpu_custom_call.1} parent=11 // pred_fallthru
          _
        // Predicated region
        $region29: #{tpu_custom_call.1} parent=11 // pred_check
          %p402 = pneg %p183
        $region30: #{tpu_custom_call.1} parent=11 // pred_check_branch
          %404 = sbr.rel (%p402) target = $region32
        $region31: #{tpu_custom_call.1} parent=11 // pred_region
          %s406 = ssub.s32 256, 256
          %407 = vsyncadd [#allocation9], %s406
          %s408 = sshll.u32 [#allocation10], 4
          %s409 = int_to_ptr.vmem [resolvable:$true] %s408
          %414 = dma.hbm_to_vmem [thread:$0]  %s6, 256, %s409, [#allocation9], 64, 64, 4
        $region32: #{tpu_custom_call.1} parent=11 // pred_fallthru
          _
        // Predicated region
        $region33: #{tpu_custom_call.1} parent=11 // pred_check
          %p415 = pneg %p204
        $region34: #{tpu_custom_call.1} parent=11 // pred_check_branch
          %417 = sbr.rel (%p415) target = $region36
        $region35: #{tpu_custom_call.1} parent=11 // pred_region
          %s419 = ssub.s32 256, 256
          %420 = vsyncadd [#allocation12], %s419
          %s421 = sshll.u32 [#allocation11], 4
          %s422 = int_to_ptr.vmem [resolvable:$true] %s421
          %427 = dma.hbm_to_vmem [thread:$0]  %s7, 256, %s422, [#allocation12], 64, 64, 4
        $region36: #{tpu_custom_call.1} parent=11 // pred_fallthru
          _
        // Predicated region
        $region37: #{tpu_custom_call.1} parent=11 // pred_check
          %p428 = pneg %p225
        $region38: #{tpu_custom_call.1} parent=11 // pred_check_branch
          %430 = sbr.rel (%p428) target = $region40
        $region39: #{tpu_custom_call.1} parent=11 // pred_region
          _
        $region40: #{tpu_custom_call.1} parent=11 // pred_fallthru
          _
        // Predicated region
        $region41: #{tpu_custom_call.1} parent=11 // pred_check
          %p431 = pneg %p246
        $region42: #{tpu_custom_call.1} parent=11 // pred_check_branch
          %433 = sbr.rel (%p431) target = $region44
        $region43: #{tpu_custom_call.1} parent=11 // pred_region
          _
        $region44: #{tpu_custom_call.1} parent=11 // pred_fallthru
          _
        // Predicated region
        $region45: #{tpu_custom_call.1} parent=11 // pred_check
          %p434 = pneg %p267
        $region46: #{tpu_custom_call.1} parent=11 // pred_check_branch
          %436 = sbr.rel (%p434) target = $region48
        $region47: #{tpu_custom_call.1} parent=11 // pred_region
          _
        $region48: #{tpu_custom_call.1} parent=11 // pred_fallthru
          _
        // Predicated region
        $region49: #{tpu_custom_call.1} parent=11 // pred_check
          %p437 = pneg %p288
        $region50: #{tpu_custom_call.1} parent=11 // pred_check_branch
          %439 = sbr.rel (%p437) target = $region52
        $region51: #{tpu_custom_call.1} parent=11 // pred_region
          _
        $region52: #{tpu_custom_call.1} parent=11 // pred_fallthru
          _
        // Predicated region
        $region53: #{tpu_custom_call.1} parent=11 // pred_check
          %p440 = pneg %p309
        $region54: #{tpu_custom_call.1} parent=11 // pred_check_branch
          %442 = sbr.rel (%p440) target = $region56
        $region55: #{tpu_custom_call.1} parent=11 // pred_region
          _
        $region56: #{tpu_custom_call.1} parent=11 // pred_fallthru
          _
      $region12: #{tpu_custom_call.1} parent=5 // pred_fallthru
        _
      %p443 = scmp.lt.s32.totalorder %s26, 2
      // Predicated region
      $region57: #{tpu_custom_call.1} parent=5 // pred_check
        %p444 = pneg %p443
      $region58: #{tpu_custom_call.1} parent=5 // pred_check_branch
        %446 = sbr.rel (%p444) target = $region60
      $region59: #{tpu_custom_call.1} parent=5 // pred_region
        // Predicated region
        $region61: #{tpu_custom_call.1} parent=59 // pred_check
          %p447 = pneg %p46
        $region62: #{tpu_custom_call.1} parent=59 // pred_check_branch
          %449 = sbr.rel (%p447) target = $region64
        $region63: #{tpu_custom_call.1} parent=59 // pred_region
          %p450 = scmp.lt.s32.totalorder %s26, 1
          %s451 = scalar_select %p450, %s26, 1
          %s452 = smul.addr %s451, 8
          %s453 = scalar_lea.vmem %s0, %s452
        $region64: #{tpu_custom_call.1} parent=59 // pred_fallthru
          _
        // Predicated region
        $region65: #{tpu_custom_call.1} parent=59 // pred_check
          %p454 = pneg %p72
        $region66: #{tpu_custom_call.1} parent=59 // pred_check_branch
          %456 = sbr.rel (%p454) target = $region68
        $region67: #{tpu_custom_call.1} parent=59 // pred_region
          %s457 = smul.u32 2, %s26
          %p458 = scmp.lt.s32.totalorder %s457, 3
          %s459 = scalar_select %p458, %s457, 3
          %s460 = smul.addr %s459, 8
          %s461 = scalar_lea.vmem %s1, %s460
          %s462 = smul.u32 2, %s26
        $region68: #{tpu_custom_call.1} parent=59 // pred_fallthru
          _
      $region60: #{tpu_custom_call.1} parent=5 // pred_fallthru
        _
      %p463 = scmp.le.s32.totalorder 1, %s26
      %p464 = scmp.lt.s32.totalorder %s26, 3
      %p465 = pnand %p463, %p464
      %p466 = pneg %p465
      // Predicated region
      $region69: #{tpu_custom_call.1} parent=5 // pred_check
        _
      $region70: #{tpu_custom_call.1} parent=5 // pred_check_branch
        %468 = sbr.rel (%p465) target = $region72
      $region71: #{tpu_custom_call.1} parent=5 // pred_region
        %s469 = ssub.s32 %s26, 1
        // Predicated region
        $region73: #{tpu_custom_call.1} parent=71 // pred_check
          %p470 = pneg %p99
        $region74: #{tpu_custom_call.1} parent=71 // pred_check_branch
          %472 = sbr.rel (%p470) target = $region76
        $region75: #{tpu_custom_call.1} parent=71 // pred_region
          %473 = dma.done [#allocation3], 256
        $region76: #{tpu_custom_call.1} parent=71 // pred_fallthru
          _
        // Predicated region
        $region77: #{tpu_custom_call.1} parent=71 // pred_check
          %p474 = pneg %p120
        $region78: #{tpu_custom_call.1} parent=71 // pred_check_branch
          %476 = sbr.rel (%p474) target = $region80
        $region79: #{tpu_custom_call.1} parent=71 // pred_region
          %477 = dma.done [#allocation6], 256
        $region80: #{tpu_custom_call.1} parent=71 // pred_fallthru
          _
        // Predicated region
        $region81: #{tpu_custom_call.1} parent=71 // pred_check
          %p478 = pneg %p141
        $region82: #{tpu_custom_call.1} parent=71 // pred_check_branch
          %480 = sbr.rel (%p478) target = $region84
        $region83: #{tpu_custom_call.1} parent=71 // pred_region
          %481 = dma.done [#allocation6], 256
        $region84: #{tpu_custom_call.1} parent=71 // pred_fallthru
          _
        // Predicated region
        $region85: #{tpu_custom_call.1} parent=71 // pred_check
          %p482 = pneg %p162
        $region86: #{tpu_custom_call.1} parent=71 // pred_check_branch
          %484 = sbr.rel (%p482) target = $region88
        $region87: #{tpu_custom_call.1} parent=71 // pred_region
          %485 = dma.done [#allocation9], 256
        $region88: #{tpu_custom_call.1} parent=71 // pred_fallthru
          _
        // Predicated region
        $region89: #{tpu_custom_call.1} parent=71 // pred_check
          %p486 = pneg %p183
        $region90: #{tpu_custom_call.1} parent=71 // pred_check_branch
          %488 = sbr.rel (%p486) target = $region92
        $region91: #{tpu_custom_call.1} parent=71 // pred_region
          %489 = dma.done [#allocation9], 256
        $region92: #{tpu_custom_call.1} parent=71 // pred_fallthru
          _
        // Predicated region
        $region93: #{tpu_custom_call.1} parent=71 // pred_check
          %p490 = pneg %p204
        $region94: #{tpu_custom_call.1} parent=71 // pred_check_branch
          %492 = sbr.rel (%p490) target = $region96
        $region95: #{tpu_custom_call.1} parent=71 // pred_region
          %493 = dma.done [#allocation12], 256
        $region96: #{tpu_custom_call.1} parent=71 // pred_fallthru
          _
        %p494 = scmp.lt.s32.totalorder %s31, 1
        %s495 = scalar_select %p494, %s31, 1
        %s496 = smul.addr %s495, 8
        %s497 = scalar_lea.vmem %s0, %s496
        %p498 = pneg %p52
        %p499 = pneg %p49
        %s500 = smul.u32 2, %s31
        %p501 = scmp.lt.s32.totalorder %s500, 3
        %s502 = scalar_select %p501, %s500, 3
        %s503 = smul.addr %s502, 8
        %s504 = scalar_lea.vmem %s1, %s503
        %p505 = pneg %p78
        %p506 = pneg %p75
        %p507 = pneg %p99
        %p508 = pneg %p96
        %p509 = pneg %p120
        %p510 = pneg %p117
        %p511 = pneg %p141
        %p512 = pneg %p138
        %p513 = pneg %p162
        %p514 = pneg %p159
        %p515 = pneg %p183
        %p516 = pneg %p180
        %p517 = pneg %p204
        %p518 = pneg %p201
        %p519 = pneg %p225
        %p520 = pneg %p222
        %p521 = pneg %p246
        %p522 = pneg %p243
        %p523 = pneg %p267
        %p524 = pneg %p264
        %p525 = pneg %p288
        %p526 = pneg %p285
        %p527 = pneg %p309
        %p528 = pneg %p306
        %p529 = pneg %p335
        %p530 = pneg %p332
        %s531 = sand.u32 %s322, 1
        %s532 = scalar_lea.sflag [#allocation4], %s531
        %s533 = sand.u32 %s322, 1
        %s534 = smul.addr %s533, 8
        %s535 = scalar_lea.vmem [#allocation13], %s534
        %p536 = scmp.lt.s32.totalorder %s31, 1
        %s537 = scalar_select %p536, %s31, 1
        %s538 = smul.addr %s537, 8
        %s539 = scalar_lea.vmem %s0, %s538
        %s540 = smul.u32 2, %s31
        %p541 = scmp.lt.s32.totalorder %s540, 3
        %s542 = scalar_select %p541, %s540, 3
        %s543 = smul.addr %s542, 8
        %s544 = scalar_lea.vmem %s1, %s543
        %s545 = smul.u32 2, %s31
        %v547 = vld [vmem:[%s539] sm:$0xff]
        %v548 = vld [vmem:[%s544] sm:$0xff]
        %v549 = vld [vmem:[%s544 + $0x8] sm:$0xff]
        %v550 = vld [vmem:[%s12] sm:$0xff]
        %v551 = vld [vmem:[%s12 + $0x8] sm:$0x3]
        %v552 = vpack.c.bf16 %v547, %v547
        %v553 = vld [vmem:[#allocation2] sm:$0xf]
        %v554 = vld [vmem:[#allocation2 + $0x4] sm:$0xf]
        %v555 = vld [vmem:[#allocation2 + $0x8] sm:$0xf]
        %v556 = vld [vmem:[#allocation2 + $0xc] sm:$0xf]
        %v557 = vld [vmem:[%s9] sm:$0x1]
        %v559 = vlaneseq
        %v560 = vshrl.u32 %v559, 7
        %v561 = vsub.s32 0, %v560
        %v562 = vrot.slane %v557, %v561
        %v568 = vunpack.c.l.b16 %v553
        %v569 = vunpack.c.l.b16 %v554
        %v570 = vunpack.c.l.b16 %v555
        %v571 = vunpack.c.l.b16 %v556
        %v572 = vpack.c.b16 %v569, %v568
        %v573 = vpack.c.b16 %v571, %v570
        %vm576 = vcmask 261120
        %v578 = vsel %vm576, %v552, 0
        %580 = vmatprep.subr.bf16.mxu0 0
        %581 = vmatpush1.bf16.msra.mxu0 %v572
        %582 = vmatprep.subr.bf16.mxu0 0
        %583 = vmatpush1.bf16.msra.mxu0 %v573
        %584 = vmatprep.subr.bf16.mxu0 0
        %585 = vmatpush1.bf16.msra.mxu0 0
        %586 = vmatprep.subr.bf16.mxu0 0
        %587 = vmatpush1.bf16.msra.mxu0 0
        %588 = vmatprep.subr.bf16.mxu0 0
        %589 = vmatpush1.bf16.msra.mxu0 0
        %590 = vmatprep.subr.bf16.mxu0 0
        %591 = vmatpush1.bf16.msra.mxu0 0
        %592 = vmatprep.subr.bf16.mxu0 0
        %593 = vmatpush1.bf16.msra.mxu0 0
        %594 = vmatprep.subr.bf16.mxu0 0
        %595 = vmatpush1.bf16.msra.mxu0 0
        %596 = vmatprep.subr.bf16.mxu0 0
        %597 = vmatpush1.bf16.msra.mxu0 0
        %598 = vmatprep.subr.bf16.mxu0 0
        %599 = vmatpush1.bf16.msra.mxu0 0
        %600 = vmatprep.subr.bf16.mxu0 0
        %601 = vmatpush1.bf16.msra.mxu0 0
        %602 = vmatprep.subr.bf16.mxu0 0
        %603 = vmatpush1.bf16.msra.mxu0 0
        %604 = vmatprep.subr.bf16.mxu0 0
        %605 = vmatpush1.bf16.msra.mxu0 0
        %606 = vmatprep.subr.bf16.mxu0 0
        %607 = vmatpush1.bf16.msra.mxu0 0
        %608 = vmatprep.subr.bf16.mxu0 0
        %609 = vmatpush1.bf16.msra.mxu0 0
        %610 = vmatprep.subr.bf16.mxu0 0
        %611 = vmatpush1.bf16.msra.mxu0 0
        %612 = vmatprep.mubr.bf16.mxu0 0
        %613 = vmatmul.mubr.bf16.gmra.mrb[0].mxu0 %v578
        %v614 = vpop.f32.mrb[0].mxu0
        %v615 = vadd.f32 %v562, %v614
        %v616 = vpop.f32.mrb[0].mxu0
        %v617 = vpop.f32.mrb[0].mxu0
        %v618 = vpop.f32.mrb[0].mxu0
        %619 = vdwg.mxu0
        %v620 = vpack.c.bf16 %v615, %v615
        %622 = vrot.lane.b32.xlu0 %v620, 96
        %v623 = vpop.permute.xlu0 %622
        %vm624 = vcmask 64512
        %v626 = vsel %vm624, %v620, 0
        %v629 = vsel %vm624, %v623, 0
        %631 = vmatprep.subr.bf16.mxu0 0
        %632 = vmatpush1.bf16.xpose.msra.mxu0 %v629
        %633 = vmatprep.subr.bf16.mxu0 0
        %634 = vmatpush1.bf16.xpose.msra.mxu0 0
        %635 = vmatprep.subr.bf16.mxu0 0
        %636 = vmatpush1.bf16.xpose.msra.mxu0 0
        %637 = vmatprep.subr.bf16.mxu0 0
        %638 = vmatpush1.bf16.xpose.msra.mxu0 0
        %639 = vmatprep.subr.bf16.mxu0 0
        %640 = vmatpush1.bf16.xpose.msra.mxu0 0
        %641 = vmatprep.subr.bf16.mxu0 0
        %642 = vmatpush1.bf16.xpose.msra.mxu0 0
        %643 = vmatprep.subr.bf16.mxu0 0
        %644 = vmatpush1.bf16.xpose.msra.mxu0 0
        %645 = vmatprep.subr.bf16.mxu0 0
        %646 = vmatpush1.bf16.xpose.msra.mxu0 0
        %647 = vmatprep.subr.bf16.mxu0 0
        %648 = vmatpush1.bf16.xpose.msra.mxu0 0
        %649 = vmatprep.subr.bf16.mxu0 0
        %650 = vmatpush1.bf16.xpose.msra.mxu0 0
        %651 = vmatprep.subr.bf16.mxu0 0
        %652 = vmatpush1.bf16.xpose.msra.mxu0 0
        %653 = vmatprep.subr.bf16.mxu0 0
        %654 = vmatpush1.bf16.xpose.msra.mxu0 0
        %655 = vmatprep.subr.bf16.mxu0 0
        %656 = vmatpush1.bf16.xpose.msra.mxu0 0
        %657 = vmatprep.subr.bf16.mxu0 0
        %658 = vmatpush1.bf16.xpose.msra.mxu0 0
        %659 = vmatprep.subr.bf16.mxu0 0
        %660 = vmatpush1.bf16.xpose.msra.mxu0 0
        %661 = vmatprep.subr.bf16.mxu0 0
        %662 = vmatpush1.bf16.xpose.msra.mxu0 0
        %663 = vmatprep.mubr.bf16.mxu0 0
        %664 = vmatmul.mubr.bf16.gmra.mrb[0].mxu0 %v626
        %v665 = vpop.f32.mrb[0].mxu0
        %v666 = vadd.f32 0.0, %v665
        %v667 = vpop.f32.mrb[0].mxu0
        %v668 = vpop.f32.mrb[0].mxu0
        %v669 = vpop.f32.mrb[0].mxu0
        %670 = vdwg.mxu0
        %v671 = vsel %vm624, %v666, -inf
        %672 = vmax.xlane.f32.xlu0 %v671
        %v673 = vpop.xlane.xlu0 %672
        %v674 = vsub.f32 %v666, %v673
        %v675 = vmul.f32 %v674, 1.442695
        %v676 = vpow.pop %v675
        %v677 = vsel %vm624, %v676, 0.0
        %678 = vadd.xlane.f32.xlu0 %v677
        %v679 = vpop.xlane.xlu0 %678
        %v680 = vrcp.pop %v679
        %v681 = vmul.f32 %v676, %v680
        %v682 = vpack.c.bf16 %v681, %v681
        %683 = vrot.lane.b32.xlu0 %v620, 64
        %v684 = vpop.permute.xlu0 %683
        %v686 = vsel %vm624, %v682, 0
        %vm688 = vcmask 1043456
        %v690 = vsel %vm688, %v684, 0
        %692 = vmatprep.subr.bf16.mxu0 0
        %693 = vmatpush1.bf16.msra.mxu0 %v690
        %694 = vmatprep.subr.bf16.mxu0 0
        %695 = vmatpush1.bf16.msra.mxu0 0
        %696 = vmatprep.subr.bf16.mxu0 0
        %697 = vmatpush1.bf16.msra.mxu0 0
        %698 = vmatprep.subr.bf16.mxu0 0
        %699 = vmatpush1.bf16.msra.mxu0 0
        %700 = vmatprep.subr.bf16.mxu0 0
        %701 = vmatpush1.bf16.msra.mxu0 0
        %702 = vmatprep.subr.bf16.mxu0 0
        %703 = vmatpush1.bf16.msra.mxu0 0
        %704 = vmatprep.subr.bf16.mxu0 0
        %705 = vmatpush1.bf16.msra.mxu0 0
        %706 = vmatprep.subr.bf16.mxu0 0
        %707 = vmatpush1.bf16.msra.mxu0 0
        %708 = vmatprep.subr.bf16.mxu0 0
        %709 = vmatpush1.bf16.msra.mxu0 0
        %710 = vmatprep.subr.bf16.mxu0 0
        %711 = vmatpush1.bf16.msra.mxu0 0
        %712 = vmatprep.subr.bf16.mxu0 0
        %713 = vmatpush1.bf16.msra.mxu0 0
        %714 = vmatprep.subr.bf16.mxu0 0
        %715 = vmatpush1.bf16.msra.mxu0 0
        %716 = vmatprep.subr.bf16.mxu0 0
        %717 = vmatpush1.bf16.msra.mxu0 0
        %718 = vmatprep.subr.bf16.mxu0 0
        %719 = vmatpush1.bf16.msra.mxu0 0
        %720 = vmatprep.subr.bf16.mxu0 0
        %721 = vmatpush1.bf16.msra.mxu0 0
        %722 = vmatprep.subr.bf16.mxu0 0
        %723 = vmatpush1.bf16.msra.mxu0 0
        %724 = vmatprep.mubr.bf16.mxu0 0
        %725 = vmatmul.mubr.bf16.gmra.mrb[0].mxu0 %v686
        %v726 = vpop.f32.mrb[0].mxu0
        %v727 = vadd.f32 0.0, %v726
        %v728 = vpop.f32.mrb[0].mxu0
        %v729 = vpop.f32.mrb[0].mxu0
        %v730 = vpop.f32.mrb[0].mxu0
        %731 = vdwg.mxu0
        %732 = vrot.lane.b32.xlu0 %v620, 120
        %v733 = vpop.permute.xlu0 %732
        %734 = vrot.lane.b32.xlu0 %v620, 88
        %v735 = vpop.permute.xlu0 %734
        %v737 = vsel %vm624, %v733, 0
        %v740 = vsel %vm624, %v735, 0
        %742 = vmatprep.subr.bf16.mxu0 0
        %743 = vmatpush1.bf16.xpose.msra.mxu0 %v740
        %744 = vmatprep.subr.bf16.mxu0 0
        %745 = vmatpush1.bf16.xpose.msra.mxu0 0
        %746 = vmatprep.subr.bf16.mxu0 0
        %747 = vmatpush1.bf16.xpose.msra.mxu0 0
        %748 = vmatprep.subr.bf16.mxu0 0
        %749 = vmatpush1.bf16.xpose.msra.mxu0 0
        %750 = vmatprep.subr.bf16.mxu0 0
        %751 = vmatpush1.bf16.xpose.msra.mxu0 0
        %752 = vmatprep.subr.bf16.mxu0 0
        %753 = vmatpush1.bf16.xpose.msra.mxu0 0
        %754 = vmatprep.subr.bf16.mxu0 0
        %755 = vmatpush1.bf16.xpose.msra.mxu0 0
        %756 = vmatprep.subr.bf16.mxu0 0
        %757 = vmatpush1.bf16.xpose.msra.mxu0 0
        %758 = vmatprep.subr.bf16.mxu0 0
        %759 = vmatpush1.bf16.xpose.msra.mxu0 0
        %760 = vmatprep.subr.bf16.mxu0 0
        %761 = vmatpush1.bf16.xpose.msra.mxu0 0
        %762 = vmatprep.subr.bf16.mxu0 0
        %763 = vmatpush1.bf16.xpose.msra.mxu0 0
        %764 = vmatprep.subr.bf16.mxu0 0
        %765 = vmatpush1.bf16.xpose.msra.mxu0 0
        %766 = vmatprep.subr.bf16.mxu0 0
        %767 = vmatpush1.bf16.xpose.msra.mxu0 0
        %768 = vmatprep.subr.bf16.mxu0 0
        %769 = vmatpush1.bf16.xpose.msra.mxu0 0
        %770 = vmatprep.subr.bf16.mxu0 0
        %771 = vmatpush1.bf16.xpose.msra.mxu0 0
        %772 = vmatprep.subr.bf16.mxu0 0
        %773 = vmatpush1.bf16.xpose.msra.mxu0 0
        %774 = vmatprep.mubr.bf16.mxu0 0
        %775 = vmatmul.mubr.bf16.gmra.mrb[0].mxu0 %v737
        %v776 = vpop.f32.mrb[0].mxu0
        %v777 = vadd.f32 0.0, %v776
        %v778 = vpop.f32.mrb[0].mxu0
        %v779 = vpop.f32.mrb[0].mxu0
        %v780 = vpop.f32.mrb[0].mxu0
        %781 = vdwg.mxu0
        %v782 = vsel %vm624, %v777, -inf
        %783 = vmax.xlane.f32.xlu0 %v782
        %v784 = vpop.xlane.xlu0 %783
        %v785 = vsub.f32 %v777, %v784
        %v786 = vmul.f32 %v785, 1.442695
        %v787 = vpow.pop %v786
        %v788 = vsel %vm624, %v787, 0.0
        %789 = vadd.xlane.f32.xlu0 %v788
        %v790 = vpop.xlane.xlu0 %789
        %v791 = vrcp.pop %v790
        %v792 = vmul.f32 %v787, %v791
        %v793 = vpack.c.bf16 %v792, %v792
        %794 = vrot.lane.b32.xlu0 %v620, 56
        %v795 = vpop.permute.xlu0 %794
        %v797 = vsel %vm624, %v793, 0
        %v800 = vsel %vm688, %v795, 0
        %802 = vmatprep.subr.bf16.mxu0 0
        %803 = vmatpush1.bf16.msra.mxu0 %v800
        %804 = vmatprep.subr.bf16.mxu0 0
        %805 = vmatpush1.bf16.msra.mxu0 0
        %806 = vmatprep.subr.bf16.mxu0 0
        %807 = vmatpush1.bf16.msra.mxu0 0
        %808 = vmatprep.subr.bf16.mxu0 0
        %809 = vmatpush1.bf16.msra.mxu0 0
        %810 = vmatprep.subr.bf16.mxu0 0
        %811 = vmatpush1.bf16.msra.mxu0 0
        %812 = vmatprep.subr.bf16.mxu0 0
        %813 = vmatpush1.bf16.msra.mxu0 0
        %814 = vmatprep.subr.bf16.mxu0 0
        %815 = vmatpush1.bf16.msra.mxu0 0
        %816 = vmatprep.subr.bf16.mxu0 0
        %817 = vmatpush1.bf16.msra.mxu0 0
        %818 = vmatprep.subr.bf16.mxu0 0
        %819 = vmatpush1.bf16.msra.mxu0 0
        %820 = vmatprep.subr.bf16.mxu0 0
        %821 = vmatpush1.bf16.msra.mxu0 0
        %822 = vmatprep.subr.bf16.mxu0 0
        %823 = vmatpush1.bf16.msra.mxu0 0
        %824 = vmatprep.subr.bf16.mxu0 0
        %825 = vmatpush1.bf16.msra.mxu0 0
        %826 = vmatprep.subr.bf16.mxu0 0
        %827 = vmatpush1.bf16.msra.mxu0 0
        %828 = vmatprep.subr.bf16.mxu0 0
        %829 = vmatpush1.bf16.msra.mxu0 0
        %830 = vmatprep.subr.bf16.mxu0 0
        %831 = vmatpush1.bf16.msra.mxu0 0
        %832 = vmatprep.subr.bf16.mxu0 0
        %833 = vmatpush1.bf16.msra.mxu0 0
        %834 = vmatprep.mubr.bf16.mxu0 0
        %835 = vmatmul.mubr.bf16.gmra.mrb[0].mxu0 %v797
        %v836 = vpop.f32.mrb[0].mxu0
        %v837 = vadd.f32 0.0, %v836
        %v838 = vpop.f32.mrb[0].mxu0
        %v839 = vpop.f32.mrb[0].mxu0
        %v840 = vpop.f32.mrb[0].mxu0
        %841 = vdwg.mxu0
        %842 = vrot.lane.b32.xlu0 %v620, 112
        %v843 = vpop.permute.xlu0 %842
        %844 = vrot.lane.b32.xlu0 %v620, 80
        %v845 = vpop.permute.xlu0 %844
        %v847 = vsel %vm624, %v843, 0
        %v850 = vsel %vm624, %v845, 0
        %852 = vmatprep.subr.bf16.mxu0 0
        %853 = vmatpush1.bf16.xpose.msra.mxu0 %v850
        %854 = vmatprep.subr.bf16.mxu0 0
        %855 = vmatpush1.bf16.xpose.msra.mxu0 0
        %856 = vmatprep.subr.bf16.mxu0 0
        %857 = vmatpush1.bf16.xpose.msra.mxu0 0
        %858 = vmatprep.subr.bf16.mxu0 0
        %859 = vmatpush1.bf16.xpose.msra.mxu0 0
        %860 = vmatprep.subr.bf16.mxu0 0
        %861 = vmatpush1.bf16.xpose.msra.mxu0 0
        %862 = vmatprep.subr.bf16.mxu0 0
        %863 = vmatpush1.bf16.xpose.msra.mxu0 0
        %864 = vmatprep.subr.bf16.mxu0 0
        %865 = vmatpush1.bf16.xpose.msra.mxu0 0
        %866 = vmatprep.subr.bf16.mxu0 0
        %867 = vmatpush1.bf16.xpose.msra.mxu0 0
        %868 = vmatprep.subr.bf16.mxu0 0
        %869 = vmatpush1.bf16.xpose.msra.mxu0 0
        %870 = vmatprep.subr.bf16.mxu0 0
        %871 = vmatpush1.bf16.xpose.msra.mxu0 0
        %872 = vmatprep.subr.bf16.mxu0 0
        %873 = vmatpush1.bf16.xpose.msra.mxu0 0
        %874 = vmatprep.subr.bf16.mxu0 0
        %875 = vmatpush1.bf16.xpose.msra.mxu0 0
        %876 = vmatprep.subr.bf16.mxu0 0
        %877 = vmatpush1.bf16.xpose.msra.mxu0 0
        %878 = vmatprep.subr.bf16.mxu0 0
        %879 = vmatpush1.bf16.xpose.msra.mxu0 0
        %880 = vmatprep.subr.bf16.mxu0 0
        %881 = vmatpush1.bf16.xpose.msra.mxu0 0
        %882 = vmatprep.subr.bf16.mxu0 0
        %883 = vmatpush1.bf16.xpose.msra.mxu0 0
        %884 = vmatprep.mubr.bf16.mxu0 0
        %885 = vmatmul.mubr.bf16.gmra.mrb[0].mxu0 %v847
        %v886 = vpop.f32.mrb[0].mxu0
        %v887 = vadd.f32 0.0, %v886
        %v888 = vpop.f32.mrb[0].mxu0
        %v889 = vpop.f32.mrb[0].mxu0
        %v890 = vpop.f32.mrb[0].mxu0
        %891 = vdwg.mxu0
        %v892 = vsel %vm624, %v887, -inf
        %893 = vmax.xlane.f32.xlu0 %v892
        %v894 = vpop.xlane.xlu0 %893
        %v895 = vsub.f32 %v887, %v894
        %v896 = vmul.f32 %v895, 1.442695
        %v897 = vpow.pop %v896
        %v898 = vsel %vm624, %v897, 0.0
        %899 = vadd.xlane.f32.xlu0 %v898
        %v900 = vpop.xlane.xlu0 %899
        %v901 = vrcp.pop %v900
        %v902 = vmul.f32 %v897, %v901
        %v903 = vpack.c.bf16 %v902, %v902
        %904 = vrot.lane.b32.xlu0 %v620, 48
        %v905 = vpop.permute.xlu0 %904
        %v907 = vsel %vm624, %v903, 0
        %v910 = vsel %vm688, %v905, 0
        %912 = vmatprep.subr.bf16.mxu0 0
        %913 = vmatpush1.bf16.msra.mxu0 %v910
        %914 = vmatprep.subr.bf16.mxu0 0
        %915 = vmatpush1.bf16.msra.mxu0 0
        %916 = vmatprep.subr.bf16.mxu0 0
        %917 = vmatpush1.bf16.msra.mxu0 0
        %918 = vmatprep.subr.bf16.mxu0 0
        %919 = vmatpush1.bf16.msra.mxu0 0
        %920 = vmatprep.subr.bf16.mxu0 0
        %921 = vmatpush1.bf16.msra.mxu0 0
        %922 = vmatprep.subr.bf16.mxu0 0
        %923 = vmatpush1.bf16.msra.mxu0 0
        %924 = vmatprep.subr.bf16.mxu0 0
        %925 = vmatpush1.bf16.msra.mxu0 0
        %926 = vmatprep.subr.bf16.mxu0 0
        %927 = vmatpush1.bf16.msra.mxu0 0
        %928 = vmatprep.subr.bf16.mxu0 0
        %929 = vmatpush1.bf16.msra.mxu0 0
        %930 = vmatprep.subr.bf16.mxu0 0
        %931 = vmatpush1.bf16.msra.mxu0 0
        %932 = vmatprep.subr.bf16.mxu0 0
        %933 = vmatpush1.bf16.msra.mxu0 0
        %934 = vmatprep.subr.bf16.mxu0 0
        %935 = vmatpush1.bf16.msra.mxu0 0
        %936 = vmatprep.subr.bf16.mxu0 0
        %937 = vmatpush1.bf16.msra.mxu0 0
        %938 = vmatprep.subr.bf16.mxu0 0
        %939 = vmatpush1.bf16.msra.mxu0 0
        %940 = vmatprep.subr.bf16.mxu0 0
        %941 = vmatpush1.bf16.msra.mxu0 0
        %942 = vmatprep.subr.bf16.mxu0 0
        %943 = vmatpush1.bf16.msra.mxu0 0
        %944 = vmatprep.mubr.bf16.mxu0 0
        %945 = vmatmul.mubr.bf16.gmra.mrb[0].mxu0 %v907
        %v946 = vpop.f32.mrb[0].mxu0
        %v947 = vadd.f32 0.0, %v946
        %v948 = vpop.f32.mrb[0].mxu0
        %v949 = vpop.f32.mrb[0].mxu0
        %v950 = vpop.f32.mrb[0].mxu0
        %951 = vdwg.mxu0
        %952 = vrot.lane.b32.xlu0 %v620, 104
        %v953 = vpop.permute.xlu0 %952
        %954 = vrot.lane.b32.xlu0 %v620, 72
        %v955 = vpop.permute.xlu0 %954
        %v957 = vsel %vm624, %v953, 0
        %v960 = vsel %vm624, %v955, 0
        %962 = vmatprep.subr.bf16.mxu0 0
        %963 = vmatpush1.bf16.xpose.msra.mxu0 %v960
        %964 = vmatprep.subr.bf16.mxu0 0
        %965 = vmatpush1.bf16.xpose.msra.mxu0 0
        %966 = vmatprep.subr.bf16.mxu0 0
        %967 = vmatpush1.bf16.xpose.msra.mxu0 0
        %968 = vmatprep.subr.bf16.mxu0 0
        %969 = vmatpush1.bf16.xpose.msra.mxu0 0
        %970 = vmatprep.subr.bf16.mxu0 0
        %971 = vmatpush1.bf16.xpose.msra.mxu0 0
        %972 = vmatprep.subr.bf16.mxu0 0
        %973 = vmatpush1.bf16.xpose.msra.mxu0 0
        %974 = vmatprep.subr.bf16.mxu0 0
        %975 = vmatpush1.bf16.xpose.msra.mxu0 0
        %976 = vmatprep.subr.bf16.mxu0 0
        %977 = vmatpush1.bf16.xpose.msra.mxu0 0
        %978 = vmatprep.subr.bf16.mxu0 0
        %979 = vmatpush1.bf16.xpose.msra.mxu0 0
        %980 = vmatprep.subr.bf16.mxu0 0
        %981 = vmatpush1.bf16.xpose.msra.mxu0 0
        %982 = vmatprep.subr.bf16.mxu0 0
        %983 = vmatpush1.bf16.xpose.msra.mxu0 0
        %984 = vmatprep.subr.bf16.mxu0 0
        %985 = vmatpush1.bf16.xpose.msra.mxu0 0
        %986 = vmatprep.subr.bf16.mxu0 0
        %987 = vmatpush1.bf16.xpose.msra.mxu0 0
        %988 = vmatprep.subr.bf16.mxu0 0
        %989 = vmatpush1.bf16.xpose.msra.mxu0 0
        %990 = vmatprep.subr.bf16.mxu0 0
        %991 = vmatpush1.bf16.xpose.msra.mxu0 0
        %992 = vmatprep.subr.bf16.mxu0 0
        %993 = vmatpush1.bf16.xpose.msra.mxu0 0
        %994 = vmatprep.mubr.bf16.mxu0 0
        %995 = vmatmul.mubr.bf16.gmra.mrb[0].mxu0 %v957
        %v996 = vpop.f32.mrb[0].mxu0
        %v997 = vadd.f32 0.0, %v996
        %v998 = vpop.f32.mrb[0].mxu0
        %v999 = vpop.f32.mrb[0].mxu0
        %v1000 = vpop.f32.mrb[0].mxu0
        %1001 = vdwg.mxu0
        %v1002 = vsel %vm624, %v997, -inf
        %1003 = vmax.xlane.f32.xlu0 %v1002
        %v1004 = vpop.xlane.xlu0 %1003
        %v1005 = vsub.f32 %v997, %v1004
        %v1006 = vmul.f32 %v1005, 1.442695
        %v1007 = vpow.pop %v1006
        %v1008 = vsel %vm624, %v1007, 0.0
        %1009 = vadd.xlane.f32.xlu0 %v1008
        %v1010 = vpop.xlane.xlu0 %1009
        %v1011 = vrcp.pop %v1010
        %v1012 = vmul.f32 %v1007, %v1011
        %v1013 = vpack.c.bf16 %v1012, %v1012
        %1014 = vrot.lane.b32.xlu0 %v620, 40
        %v1015 = vpop.permute.xlu0 %1014
        %v1017 = vsel %vm624, %v1013, 0
        %v1020 = vsel %vm688, %v1015, 0
        %1022 = vmatprep.subr.bf16.mxu0 0
        %1023 = vmatpush1.bf16.msra.mxu0 %v1020
        %1024 = vmatprep.subr.bf16.mxu0 0
        %1025 = vmatpush1.bf16.msra.mxu0 0
        %1026 = vmatprep.subr.bf16.mxu0 0
        %1027 = vmatpush1.bf16.msra.mxu0 0
        %1028 = vmatprep.subr.bf16.mxu0 0
        %1029 = vmatpush1.bf16.msra.mxu0 0
        %1030 = vmatprep.subr.bf16.mxu0 0
        %1031 = vmatpush1.bf16.msra.mxu0 0
        %1032 = vmatprep.subr.bf16.mxu0 0
        %1033 = vmatpush1.bf16.msra.mxu0 0
        %1034 = vmatprep.subr.bf16.mxu0 0
        %1035 = vmatpush1.bf16.msra.mxu0 0
        %1036 = vmatprep.subr.bf16.mxu0 0
        %1037 = vmatpush1.bf16.msra.mxu0 0
        %1038 = vmatprep.subr.bf16.mxu0 0
        %1039 = vmatpush1.bf16.msra.mxu0 0
        %1040 = vmatprep.subr.bf16.mxu0 0
        %1041 = vmatpush1.bf16.msra.mxu0 0
        %1042 = vmatprep.subr.bf16.mxu0 0
        %1043 = vmatpush1.bf16.msra.mxu0 0
        %1044 = vmatprep.subr.bf16.mxu0 0
        %1045 = vmatpush1.bf16.msra.mxu0 0
        %1046 = vmatprep.subr.bf16.mxu0 0
        %1047 = vmatpush1.bf16.msra.mxu0 0
        %1048 = vmatprep.subr.bf16.mxu0 0
        %1049 = vmatpush1.bf16.msra.mxu0 0
        %1050 = vmatprep.subr.bf16.mxu0 0
        %1051 = vmatpush1.bf16.msra.mxu0 0
        %1052 = vmatprep.subr.bf16.mxu0 0
        %1053 = vmatpush1.bf16.msra.mxu0 0
        %1054 = vmatprep.mubr.bf16.mxu0 0
        %1055 = vmatmul.mubr.bf16.gmra.mrb[0].mxu0 %v1017
        %v1056 = vpop.f32.mrb[0].mxu0
        %v1057 = vadd.f32 0.0, %v1056
        %v1058 = vpop.f32.mrb[0].mxu0
        %v1059 = vpop.f32.mrb[0].mxu0
        %v1060 = vpop.f32.mrb[0].mxu0
        %1061 = vdwg.mxu0
        %1063 = vrot.lane.b32.xlu0 %v837, 8
        %v1064 = vpop.permute.xlu0 %1063
        %1067 = vrot.lane.b32.xlu0 %v947, 16
        %v1068 = vpop.permute.xlu0 %1067
        %1071 = vrot.lane.b32.xlu0 %v1057, 24
        %v1072 = vpop.permute.xlu0 %1071
        %v1074 = vsel %vm624, %v727, %v1064
        %vm1075 = vcmask 130048
        %v1076 = vsel %vm1075, %v1074, %v1068
        %vm1077 = vcmask 195584
        %v1078 = vsel %vm1077, %v1076, %v1072
        %v1079 = vpack.c.bf16 %v1078, %v1078
        %v1080 = vld [vmem:[#allocation5] sm:$0xf]
        %v1081 = vld [vmem:[#allocation5 + $0x4] sm:$0xf]
        %v1082 = vld [vmem:[#allocation5 + $0x8] sm:$0xf]
        %v1083 = vld [vmem:[#allocation5 + $0xc] sm:$0xf]
        %v1084 = vlaneseq
        %v1085 = vshrl.u32 %v1084, 7
        %v1086 = vsub.s32 0, %v1085
        %v1087 = vrot.slane %v550, %v1086
        %v1092 = vunpack.c.l.b16 %v1080
        %v1093 = vunpack.c.l.b16 %v1081
        %v1094 = vunpack.c.l.b16 %v1082
        %v1095 = vunpack.c.l.b16 %v1083
        %v1096 = vpack.c.b16 %v1093, %v1092
        %v1097 = vpack.c.b16 %v1095, %v1094
        %v1101 = vsel %vm576, %v1079, 0
        %1103 = vmatprep.subr.bf16.mxu0 0
        %1104 = vmatpush1.bf16.msra.mxu0 %v1096
        %1105 = vmatprep.subr.bf16.mxu0 0
        %1106 = vmatpush1.bf16.msra.mxu0 %v1097
        %1107 = vmatprep.subr.bf16.mxu0 0
        %1108 = vmatpush1.bf16.msra.mxu0 0
        %1109 = vmatprep.subr.bf16.mxu0 0
        %1110 = vmatpush1.bf16.msra.mxu0 0
        %1111 = vmatprep.subr.bf16.mxu0 0
        %1112 = vmatpush1.bf16.msra.mxu0 0
        %1113 = vmatprep.subr.bf16.mxu0 0
        %1114 = vmatpush1.bf16.msra.mxu0 0
        %1115 = vmatprep.subr.bf16.mxu0 0
        %1116 = vmatpush1.bf16.msra.mxu0 0
        %1117 = vmatprep.subr.bf16.mxu0 0
        %1118 = vmatpush1.bf16.msra.mxu0 0
        %1119 = vmatprep.subr.bf16.mxu0 0
        %1120 = vmatpush1.bf16.msra.mxu0 0
        %1121 = vmatprep.subr.bf16.mxu0 0
        %1122 = vmatpush1.bf16.msra.mxu0 0
        %1123 = vmatprep.subr.bf16.mxu0 0
        %1124 = vmatpush1.bf16.msra.mxu0 0
        %1125 = vmatprep.subr.bf16.mxu0 0
        %1126 = vmatpush1.bf16.msra.mxu0 0
        %1127 = vmatprep.subr.bf16.mxu0 0
        %1128 = vmatpush1.bf16.msra.mxu0 0
        %1129 = vmatprep.subr.bf16.mxu0 0
        %1130 = vmatpush1.bf16.msra.mxu0 0
        %1131 = vmatprep.subr.bf16.mxu0 0
        %1132 = vmatpush1.bf16.msra.mxu0 0
        %1133 = vmatprep.subr.bf16.mxu0 0
        %1134 = vmatpush1.bf16.msra.mxu0 0
        %1135 = vmatprep.mubr.bf16.mxu0 0
        %1136 = vmatmul.mubr.bf16.gmra.mrb[0].mxu0 %v1101
        %v1137 = vpop.f32.mrb[0].mxu0
        %v1138 = vadd.f32 %v1087, %v1137
        %v1139 = vpop.f32.mrb[0].mxu0
        %v1140 = vpop.f32.mrb[0].mxu0
        %v1141 = vpop.f32.mrb[0].mxu0
        %1142 = vdwg.mxu0
        %v1143 = vadd.f32 %v547, %v1138
        %v1144 = vsel %vm576, %v1143, 0.0
        %1145 = vadd.xlane.f32.xlu0 %v1144
        %v1146 = vpop.xlane.xlu0 %1145
        %v1147 = vrcp.pop 32.0
        %v1148 = vmul.f32 %v1146, %v1147
        %v1149 = vmul.f32 %v1143, %v1143
        %v1150 = vsel %vm576, %v1149, 0.0
        %1151 = vadd.xlane.f32.xlu0 %v1150
        %v1152 = vpop.xlane.xlu0 %1151
        %v1153 = vmul.f32 %v1152, %v1147
        %v1154 = vmul.f32 %v1148, %v1148
        %v1155 = vsub.f32 %v1153, %v1154
        %v1156 = vsub.f32 %v1143, %v1148
        %v1157 = vadd.f32 %v1155, 1e-05
        %v1158 = vrsqrt.pop %v1157
        %v1159 = vmul.f32 %v1156, %v1158
        %v1160 = vlaneseq
        %v1161 = vshrl.u32 %v1160, 7
        %v1162 = vsub.s32 4, %v1161
        %v1163 = vrot.slane %v550, %v1162
        %v1164 = vmul.f32 %v1159, %v1163
        %v1165 = vlaneseq
        %v1166 = vshrl.u32 %v1165, 7
        %v1167 = vsub.s32 7, %v1166
        %v1168 = vrot.slane %v550, %v1167
        %v1169 = vadd.f32 %v1164, %v1168
        %v1170 = vpack.c.bf16 %v1169, %v1169
        %v1171 = vld [vmem:[#allocation7] sm:$0xf]
        %v1172 = vld [vmem:[#allocation7 + $0x4] sm:$0xf]
        %v1173 = vld [vmem:[#allocation7 + $0x8] sm:$0xf]
        %v1174 = vld [vmem:[#allocation7 + $0xc] sm:$0xf]
        %v1175 = vlaneseq
        %v1176 = vshrl.u32 %v1175, 7
        %v1177 = vsub.s32 1, %v1176
        %v1178 = vrot.slane %v550, %v1177
        %v1183 = vunpack.c.l.b16 %v1171
        %v1184 = vunpack.c.l.b16 %v1172
        %v1185 = vunpack.c.l.b16 %v1173
        %v1186 = vunpack.c.l.b16 %v1174
        %v1187 = vpack.c.b16 %v1184, %v1183
        %v1188 = vpack.c.b16 %v1186, %v1185
        %v1192 = vsel %vm576, %v1170, 0
        %1194 = vmatprep.subr.bf16.mxu0 0
        %1195 = vmatpush1.bf16.msra.mxu0 %v1187
        %1196 = vmatprep.subr.bf16.mxu0 0
        %1197 = vmatpush1.bf16.msra.mxu0 %v1188
        %1198 = vmatprep.subr.bf16.mxu0 0
        %1199 = vmatpush1.bf16.msra.mxu0 0
        %1200 = vmatprep.subr.bf16.mxu0 0
        %1201 = vmatpush1.bf16.msra.mxu0 0
        %1202 = vmatprep.subr.bf16.mxu0 0
        %1203 = vmatpush1.bf16.msra.mxu0 0
        %1204 = vmatprep.subr.bf16.mxu0 0
        %1205 = vmatpush1.bf16.msra.mxu0 0
        %1206 = vmatprep.subr.bf16.mxu0 0
        %1207 = vmatpush1.bf16.msra.mxu0 0
        %1208 = vmatprep.subr.bf16.mxu0 0
        %1209 = vmatpush1.bf16.msra.mxu0 0
        %1210 = vmatprep.subr.bf16.mxu0 0
        %1211 = vmatpush1.bf16.msra.mxu0 0
        %1212 = vmatprep.subr.bf16.mxu0 0
        %1213 = vmatpush1.bf16.msra.mxu0 0
        %1214 = vmatprep.subr.bf16.mxu0 0
        %1215 = vmatpush1.bf16.msra.mxu0 0
        %1216 = vmatprep.subr.bf16.mxu0 0
        %1217 = vmatpush1.bf16.msra.mxu0 0
        %1218 = vmatprep.subr.bf16.mxu0 0
        %1219 = vmatpush1.bf16.msra.mxu0 0
        %1220 = vmatprep.subr.bf16.mxu0 0
        %1221 = vmatpush1.bf16.msra.mxu0 0
        %1222 = vmatprep.subr.bf16.mxu0 0
        %1223 = vmatpush1.bf16.msra.mxu0 0
        %1224 = vmatprep.subr.bf16.mxu0 0
        %1225 = vmatpush1.bf16.msra.mxu0 0
        %1226 = vmatprep.mubr.bf16.mxu0 0
        %1227 = vmatmul.mubr.bf16.gmra.mrb[0].mxu0 %v1192
        %v1228 = vpop.f32.mrb[0].mxu0
        %v1229 = vadd.f32 %v1178, %v1228
        %v1230 = vpop.f32.mrb[0].mxu0
        %v1231 = vpop.f32.mrb[0].mxu0
        %v1232 = vpop.f32.mrb[0].mxu0
        %1233 = vdwg.mxu0
        %v1234 = vpack.c.bf16 %v549, %v548
        %v1235 = vld [vmem:[#allocation8] sm:$0xf]
        %v1236 = vld [vmem:[#allocation8 + $0x4] sm:$0xf]
        %v1237 = vld [vmem:[#allocation8 + $0x8] sm:$0xf]
        %v1238 = vld [vmem:[#allocation8 + $0xc] sm:$0xf]
        %v1239 = vld [vmem:[%s10] sm:$0x1]
        %v1241 = vlaneseq
        %v1242 = vshrl.u32 %v1241, 7
        %v1243 = vsub.s32 0, %v1242
        %v1244 = vrot.slane %v1239, %v1243
        %v1250 = vunpack.c.l.b16 %v1235
        %v1251 = vunpack.c.l.b16 %v1236
        %v1252 = vunpack.c.l.b16 %v1237
        %v1253 = vunpack.c.l.b16 %v1238
        %v1254 = vpack.c.b16 %v1251, %v1250
        %v1255 = vpack.c.b16 %v1253, %v1252
        %v1259 = vsel %vm576, %v1234, 0
        %1261 = vmatprep.subr.bf16.mxu0 0
        %1262 = vmatpush1.bf16.msra.mxu0 %v1254
        %1263 = vmatprep.subr.bf16.mxu0 0
        %1264 = vmatpush1.bf16.msra.mxu0 %v1255
        %1265 = vmatprep.subr.bf16.mxu0 0
        %1266 = vmatpush1.bf16.msra.mxu0 0
        %1267 = vmatprep.subr.bf16.mxu0 0
        %1268 = vmatpush1.bf16.msra.mxu0 0
        %1269 = vmatprep.subr.bf16.mxu0 0
        %1270 = vmatpush1.bf16.msra.mxu0 0
        %1271 = vmatprep.subr.bf16.mxu0 0
        %1272 = vmatpush1.bf16.msra.mxu0 0
        %1273 = vmatprep.subr.bf16.mxu0 0
        %1274 = vmatpush1.bf16.msra.mxu0 0
        %1275 = vmatprep.subr.bf16.mxu0 0
        %1276 = vmatpush1.bf16.msra.mxu0 0
        %1277 = vmatprep.subr.bf16.mxu0 0
        %1278 = vmatpush1.bf16.msra.mxu0 0
        %1279 = vmatprep.subr.bf16.mxu0 0
        %1280 = vmatpush1.bf16.msra.mxu0 0
        %1281 = vmatprep.subr.bf16.mxu0 0
        %1282 = vmatpush1.bf16.msra.mxu0 0
        %1283 = vmatprep.subr.bf16.mxu0 0
        %1284 = vmatpush1.bf16.msra.mxu0 0
        %1285 = vmatprep.subr.bf16.mxu0 0
        %1286 = vmatpush1.bf16.msra.mxu0 0
        %1287 = vmatprep.subr.bf16.mxu0 0
        %1288 = vmatpush1.bf16.msra.mxu0 0
        %1289 = vmatprep.subr.bf16.mxu0 0
        %1290 = vmatpush1.bf16.msra.mxu0 0
        %1291 = vmatprep.subr.bf16.mxu0 0
        %1292 = vmatpush1.bf16.msra.mxu0 0
        %1293 = vmatprep.mubr.bf16.mxu0 0
        %1294 = vmatmul.mubr.bf16.gmra.mrb[0].mxu0 %v1259
        %v1295 = vpop.f32.mrb[0].mxu0
        %v1296 = vadd.f32 %v1244, %v1295
        %v1297 = vpop.f32.mrb[0].mxu0
        %v1298 = vpop.f32.mrb[0].mxu0
        %v1299 = vadd.f32 %v1244, %v1298
        %v1300 = vpop.f32.mrb[0].mxu0
        %1301 = vdwg.mxu0
        %v1302 = vpack.c.bf16 %v1229, %v1229
        %v1303 = vpack.c.bf16 %v1299, %v1296
        %v1305 = vsel %vm624, %v1302, 0
        %v1308 = vsel %vm624, %v1303, 0
        %1310 = vmatprep.subr.bf16.mxu0 0
        %1311 = vmatpush1.bf16.xpose.msra.mxu0 %v1308
        %1312 = vmatprep.subr.bf16.mxu0 0
        %1313 = vmatpush1.bf16.xpose.msra.mxu0 0
        %1314 = vmatprep.subr.bf16.mxu0 0
        %1315 = vmatpush1.bf16.xpose.msra.mxu0 0
        %1316 = vmatprep.subr.bf16.mxu0 0
        %1317 = vmatpush1.bf16.xpose.msra.mxu0 0
        %1318 = vmatprep.subr.bf16.mxu0 0
        %1319 = vmatpush1.bf16.xpose.msra.mxu0 0
        %1320 = vmatprep.subr.bf16.mxu0 0
        %1321 = vmatpush1.bf16.xpose.msra.mxu0 0
        %1322 = vmatprep.subr.bf16.mxu0 0
        %1323 = vmatpush1.bf16.xpose.msra.mxu0 0
        %1324 = vmatprep.subr.bf16.mxu0 0
        %1325 = vmatpush1.bf16.xpose.msra.mxu0 0
        %1326 = vmatprep.subr.bf16.mxu0 0
        %1327 = vmatpush1.bf16.xpose.msra.mxu0 0
        %1328 = vmatprep.subr.bf16.mxu0 0
        %1329 = vmatpush1.bf16.xpose.msra.mxu0 0
        %1330 = vmatprep.subr.bf16.mxu0 0
        %1331 = vmatpush1.bf16.xpose.msra.mxu0 0
        %1332 = vmatprep.subr.bf16.mxu0 0
        %1333 = vmatpush1.bf16.xpose.msra.mxu0 0
        %1334 = vmatprep.subr.bf16.mxu0 0
        %1335 = vmatpush1.bf16.xpose.msra.mxu0 0
        %1336 = vmatprep.subr.bf16.mxu0 0
        %1337 = vmatpush1.bf16.xpose.msra.mxu0 0
        %1338 = vmatprep.subr.bf16.mxu0 0
        %1339 = vmatpush1.bf16.xpose.msra.mxu0 0
        %1340 = vmatprep.subr.bf16.mxu0 0
        %1341 = vmatpush1.bf16.xpose.msra.mxu0 0
        %1342 = vmatprep.mubr.bf16.mxu0 0
        %1343 = vmatmul.mubr.bf16.gmra.mrb[0].mxu0 %v1305
        %v1344 = vpop.f32.mrb[0].mxu0
        %v1345 = vadd.f32 0.0, %v1344
        %v1346 = vpop.f32.mrb[0].mxu0
        %v1347 = vpop.f32.mrb[0].mxu0
        %v1348 = vpop.f32.mrb[0].mxu0
        %1349 = vdwg.mxu0
        %v1350 = vsel %vm1075, %v1345, -inf
        %1351 = vmax.xlane.f32.xlu0 %v1350
        %v1352 = vpop.xlane.xlu0 %1351
        %v1353 = vsub.f32 %v1345, %v1352
        %v1354 = vmul.f32 %v1353, 1.442695
        %v1355 = vpow.pop %v1354
        %v1356 = vsel %vm1075, %v1355, 0.0
        %1357 = vadd.xlane.f32.xlu0 %v1356
        %v1358 = vpop.xlane.xlu0 %1357
        %v1359 = vrcp.pop %v1358
        %v1360 = vmul.f32 %v1355, %v1359
        %v1361 = vpack.c.bf16 %v1360, %v1360
        %1363 = vrot.lane.b32.xlu0 %v1303, 96
        %v1364 = vpop.permute.xlu0 %1363
        %v1367 = vsel %vm1075, %v1361, 0
        %1369 = vmatprep.subr.bf16.mxu0 0
        %1370 = vmatpush1.bf16.msra.mxu0 %v1364
        %1371 = vmatprep.subr.bf16.mxu0 0
        %1372 = vmatpush1.bf16.msra.mxu0 0
        %1373 = vmatprep.subr.bf16.mxu0 0
        %1374 = vmatpush1.bf16.msra.mxu0 0
        %1375 = vmatprep.subr.bf16.mxu0 0
        %1376 = vmatpush1.bf16.msra.mxu0 0
        %1377 = vmatprep.subr.bf16.mxu0 0
        %1378 = vmatpush1.bf16.msra.mxu0 0
        %1379 = vmatprep.subr.bf16.mxu0 0
        %1380 = vmatpush1.bf16.msra.mxu0 0
        %1381 = vmatprep.subr.bf16.mxu0 0
        %1382 = vmatpush1.bf16.msra.mxu0 0
        %1383 = vmatprep.subr.bf16.mxu0 0
        %1384 = vmatpush1.bf16.msra.mxu0 0
        %1385 = vmatprep.subr.bf16.mxu0 0
        %1386 = vmatpush1.bf16.msra.mxu0 0
        %1387 = vmatprep.subr.bf16.mxu0 0
        %1388 = vmatpush1.bf16.msra.mxu0 0
        %1389 = vmatprep.subr.bf16.mxu0 0
        %1390 = vmatpush1.bf16.msra.mxu0 0
        %1391 = vmatprep.subr.bf16.mxu0 0
        %1392 = vmatpush1.bf16.msra.mxu0 0
        %1393 = vmatprep.subr.bf16.mxu0 0
        %1394 = vmatpush1.bf16.msra.mxu0 0
        %1395 = vmatprep.subr.bf16.mxu0 0
        %1396 = vmatpush1.bf16.msra.mxu0 0
        %1397 = vmatprep.subr.bf16.mxu0 0
        %1398 = vmatpush1.bf16.msra.mxu0 0
        %1399 = vmatprep.subr.bf16.mxu0 0
        %1400 = vmatpush1.bf16.msra.mxu0 0
        %1401 = vmatprep.mubr.bf16.mxu0 0
        %1402 = vmatmul.mubr.bf16.gmra.mrb[0].mxu0 %v1367
        %v1403 = vpop.f32.mrb[0].mxu0
        %v1404 = vadd.f32 0.0, %v1403
        %v1405 = vpop.f32.mrb[0].mxu0
        %v1406 = vpop.f32.mrb[0].mxu0
        %v1407 = vpop.f32.mrb[0].mxu0
        %1408 = vdwg.mxu0
        %1410 = vrot.lane.b32.xlu0 %v1302, 120
        %v1411 = vpop.permute.xlu0 %1410
        %1412 = vrot.lane.b32.xlu0 %v1303, 120
        %v1413 = vpop.permute.xlu0 %1412
        %v1415 = vsel %vm624, %v1411, 0
        %v1418 = vsel %vm624, %v1413, 0
        %1420 = vmatprep.subr.bf16.mxu0 0
        %1421 = vmatpush1.bf16.xpose.msra.mxu0 %v1418
        %1422 = vmatprep.subr.bf16.mxu0 0
        %1423 = vmatpush1.bf16.xpose.msra.mxu0 0
        %1424 = vmatprep.subr.bf16.mxu0 0
        %1425 = vmatpush1.bf16.xpose.msra.mxu0 0
        %1426 = vmatprep.subr.bf16.mxu0 0
        %1427 = vmatpush1.bf16.xpose.msra.mxu0 0
        %1428 = vmatprep.subr.bf16.mxu0 0
        %1429 = vmatpush1.bf16.xpose.msra.mxu0 0
        %1430 = vmatprep.subr.bf16.mxu0 0
        %1431 = vmatpush1.bf16.xpose.msra.mxu0 0
        %1432 = vmatprep.subr.bf16.mxu0 0
        %1433 = vmatpush1.bf16.xpose.msra.mxu0 0
        %1434 = vmatprep.subr.bf16.mxu0 0
        %1435 = vmatpush1.bf16.xpose.msra.mxu0 0
        %1436 = vmatprep.subr.bf16.mxu0 0
        %1437 = vmatpush1.bf16.xpose.msra.mxu0 0
        %1438 = vmatprep.subr.bf16.mxu0 0
        %1439 = vmatpush1.bf16.xpose.msra.mxu0 0
        %1440 = vmatprep.subr.bf16.mxu0 0
        %1441 = vmatpush1.bf16.xpose.msra.mxu0 0
        %1442 = vmatprep.subr.bf16.mxu0 0
        %1443 = vmatpush1.bf16.xpose.msra.mxu0 0
        %1444 = vmatprep.subr.bf16.mxu0 0
        %1445 = vmatpush1.bf16.xpose.msra.mxu0 0
        %1446 = vmatprep.subr.bf16.mxu0 0
        %1447 = vmatpush1.bf16.xpose.msra.mxu0 0
        %1448 = vmatprep.subr.bf16.mxu0 0
        %1449 = vmatpush1.bf16.xpose.msra.mxu0 0
        %1450 = vmatprep.subr.bf16.mxu0 0
        %1451 = vmatpush1.bf16.xpose.msra.mxu0 0
        %1452 = vmatprep.mubr.bf16.mxu0 0
        %1453 = vmatmul.mubr.bf16.gmra.mrb[0].mxu0 %v1415
        %v1454 = vpop.f32.mrb[0].mxu0
        %v1455 = vadd.f32 0.0, %v1454
        %v1456 = vpop.f32.mrb[0].mxu0
        %v1457 = vpop.f32.mrb[0].mxu0
        %v1458 = vpop.f32.mrb[0].mxu0
        %1459 = vdwg.mxu0
        %v1460 = vsel %vm1075, %v1455, -inf
        %1461 = vmax.xlane.f32.xlu0 %v1460
        %v1462 = vpop.xlane.xlu0 %1461
        %v1463 = vsub.f32 %v1455, %v1462
        %v1464 = vmul.f32 %v1463, 1.442695
        %v1465 = vpow.pop %v1464
        %v1466 = vsel %vm1075, %v1465, 0.0
        %1467 = vadd.xlane.f32.xlu0 %v1466
        %v1468 = vpop.xlane.xlu0 %1467
        %v1469 = vrcp.pop %v1468
        %v1470 = vmul.f32 %v1465, %v1469
        %v1471 = vpack.c.bf16 %v1470, %v1470
        %1472 = vrot.lane.b32.xlu0 %v1303, 88
        %v1473 = vpop.permute.xlu0 %1472
        %v1476 = vsel %vm1075, %v1471, 0
        %1478 = vmatprep.subr.bf16.mxu0 0
        %1479 = vmatpush1.bf16.msra.mxu0 %v1473
        %1480 = vmatprep.subr.bf16.mxu0 0
        %1481 = vmatpush1.bf16.msra.mxu0 0
        %1482 = vmatprep.subr.bf16.mxu0 0
        %1483 = vmatpush1.bf16.msra.mxu0 0
        %1484 = vmatprep.subr.bf16.mxu0 0
        %1485 = vmatpush1.bf16.msra.mxu0 0
        %1486 = vmatprep.subr.bf16.mxu0 0
        %1487 = vmatpush1.bf16.msra.mxu0 0
        %1488 = vmatprep.subr.bf16.mxu0 0
        %1489 = vmatpush1.bf16.msra.mxu0 0
        %1490 = vmatprep.subr.bf16.mxu0 0
        %1491 = vmatpush1.bf16.msra.mxu0 0
        %1492 = vmatprep.subr.bf16.mxu0 0
        %1493 = vmatpush1.bf16.msra.mxu0 0
        %1494 = vmatprep.subr.bf16.mxu0 0
        %1495 = vmatpush1.bf16.msra.mxu0 0
        %1496 = vmatprep.subr.bf16.mxu0 0
        %1497 = vmatpush1.bf16.msra.mxu0 0
        %1498 = vmatprep.subr.bf16.mxu0 0
        %1499 = vmatpush1.bf16.msra.mxu0 0
        %1500 = vmatprep.subr.bf16.mxu0 0
        %1501 = vmatpush1.bf16.msra.mxu0 0
        %1502 = vmatprep.subr.bf16.mxu0 0
        %1503 = vmatpush1.bf16.msra.mxu0 0
        %1504 = vmatprep.subr.bf16.mxu0 0
        %1505 = vmatpush1.bf16.msra.mxu0 0
        %1506 = vmatprep.subr.bf16.mxu0 0
        %1507 = vmatpush1.bf16.msra.mxu0 0
        %1508 = vmatprep.subr.bf16.mxu0 0
        %1509 = vmatpush1.bf16.msra.mxu0 0
        %1510 = vmatprep.mubr.bf16.mxu0 0
        %1511 = vmatmul.mubr.bf16.gmra.mrb[0].mxu0 %v1476
        %v1512 = vpop.f32.mrb[0].mxu0
        %v1513 = vadd.f32 0.0, %v1512
        %v1514 = vpop.f32.mrb[0].mxu0
        %v1515 = vpop.f32.mrb[0].mxu0
        %v1516 = vpop.f32.mrb[0].mxu0
        %1517 = vdwg.mxu0
        %1518 = vrot.lane.b32.xlu0 %v1302, 112
        %v1519 = vpop.permute.xlu0 %1518
        %1520 = vrot.lane.b32.xlu0 %v1303, 112
        %v1521 = vpop.permute.xlu0 %1520
        %v1523 = vsel %vm624, %v1519, 0
        %v1526 = vsel %vm624, %v1521, 0
        %1528 = vmatprep.subr.bf16.mxu0 0
        %1529 = vmatpush1.bf16.xpose.msra.mxu0 %v1526
        %1530 = vmatprep.subr.bf16.mxu0 0
        %1531 = vmatpush1.bf16.xpose.msra.mxu0 0
        %1532 = vmatprep.subr.bf16.mxu0 0
        %1533 = vmatpush1.bf16.xpose.msra.mxu0 0
        %1534 = vmatprep.subr.bf16.mxu0 0
        %1535 = vmatpush1.bf16.xpose.msra.mxu0 0
        %1536 = vmatprep.subr.bf16.mxu0 0
        %1537 = vmatpush1.bf16.xpose.msra.mxu0 0
        %1538 = vmatprep.subr.bf16.mxu0 0
        %1539 = vmatpush1.bf16.xpose.msra.mxu0 0
        %1540 = vmatprep.subr.bf16.mxu0 0
        %1541 = vmatpush1.bf16.xpose.msra.mxu0 0
        %1542 = vmatprep.subr.bf16.mxu0 0
        %1543 = vmatpush1.bf16.xpose.msra.mxu0 0
        %1544 = vmatprep.subr.bf16.mxu0 0
        %1545 = vmatpush1.bf16.xpose.msra.mxu0 0
        %1546 = vmatprep.subr.bf16.mxu0 0
        %1547 = vmatpush1.bf16.xpose.msra.mxu0 0
        %1548 = vmatprep.subr.bf16.mxu0 0
        %1549 = vmatpush1.bf16.xpose.msra.mxu0 0
        %1550 = vmatprep.subr.bf16.mxu0 0
        %1551 = vmatpush1.bf16.xpose.msra.mxu0 0
        %1552 = vmatprep.subr.bf16.mxu0 0
        %1553 = vmatpush1.bf16.xpose.msra.mxu0 0
        %1554 = vmatprep.subr.bf16.mxu0 0
        %1555 = vmatpush1.bf16.xpose.msra.mxu0 0
        %1556 = vmatprep.subr.bf16.mxu0 0
        %1557 = vmatpush1.bf16.xpose.msra.mxu0 0
        %1558 = vmatprep.subr.bf16.mxu0 0
        %1559 = vmatpush1.bf16.xpose.msra.mxu0 0
        %1560 = vmatprep.mubr.bf16.mxu0 0
        %1561 = vmatmul.mubr.bf16.gmra.mrb[0].mxu0 %v1523
        %v1562 = vpop.f32.mrb[0].mxu0
        %v1563 = vadd.f32 0.0, %v1562
        %v1564 = vpop.f32.mrb[0].mxu0
        %v1565 = vpop.f32.mrb[0].mxu0
        %v1566 = vpop.f32.mrb[0].mxu0
        %1567 = vdwg.mxu0
        %v1568 = vsel %vm1075, %v1563, -inf
        %1569 = vmax.xlane.f32.xlu0 %v1568
        %v1570 = vpop.xlane.xlu0 %1569
        %v1571 = vsub.f32 %v1563, %v1570
        %v1572 = vmul.f32 %v1571, 1.442695
        %v1573 = vpow.pop %v1572
        %v1574 = vsel %vm1075, %v1573, 0.0
        %1575 = vadd.xlane.f32.xlu0 %v1574
        %v1576 = vpop.xlane.xlu0 %1575
        %v1577 = vrcp.pop %v1576
        %v1578 = vmul.f32 %v1573, %v1577
        %v1579 = vpack.c.bf16 %v1578, %v1578
        %1580 = vrot.lane.b32.xlu0 %v1303, 80
        %v1581 = vpop.permute.xlu0 %1580
        %v1584 = vsel %vm1075, %v1579, 0
        %1586 = vmatprep.subr.bf16.mxu0 0
        %1587 = vmatpush1.bf16.msra.mxu0 %v1581
        %1588 = vmatprep.subr.bf16.mxu0 0
        %1589 = vmatpush1.bf16.msra.mxu0 0
        %1590 = vmatprep.subr.bf16.mxu0 0
        %1591 = vmatpush1.bf16.msra.mxu0 0
        %1592 = vmatprep.subr.bf16.mxu0 0
        %1593 = vmatpush1.bf16.msra.mxu0 0
        %1594 = vmatprep.subr.bf16.mxu0 0
        %1595 = vmatpush1.bf16.msra.mxu0 0
        %1596 = vmatprep.subr.bf16.mxu0 0
        %1597 = vmatpush1.bf16.msra.mxu0 0
        %1598 = vmatprep.subr.bf16.mxu0 0
        %1599 = vmatpush1.bf16.msra.mxu0 0
        %1600 = vmatprep.subr.bf16.mxu0 0
        %1601 = vmatpush1.bf16.msra.mxu0 0
        %1602 = vmatprep.subr.bf16.mxu0 0
        %1603 = vmatpush1.bf16.msra.mxu0 0
        %1604 = vmatprep.subr.bf16.mxu0 0
        %1605 = vmatpush1.bf16.msra.mxu0 0
        %1606 = vmatprep.subr.bf16.mxu0 0
        %1607 = vmatpush1.bf16.msra.mxu0 0
        %1608 = vmatprep.subr.bf16.mxu0 0
        %1609 = vmatpush1.bf16.msra.mxu0 0
        %1610 = vmatprep.subr.bf16.mxu0 0
        %1611 = vmatpush1.bf16.msra.mxu0 0
        %1612 = vmatprep.subr.bf16.mxu0 0
        %1613 = vmatpush1.bf16.msra.mxu0 0
        %1614 = vmatprep.subr.bf16.mxu0 0
        %1615 = vmatpush1.bf16.msra.mxu0 0
        %1616 = vmatprep.subr.bf16.mxu0 0
        %1617 = vmatpush1.bf16.msra.mxu0 0
        %1618 = vmatprep.mubr.bf16.mxu0 0
        %1619 = vmatmul.mubr.bf16.gmra.mrb[0].mxu0 %v1584
        %v1620 = vpop.f32.mrb[0].mxu0
        %v1621 = vadd.f32 0.0, %v1620
        %v1622 = vpop.f32.mrb[0].mxu0
        %v1623 = vpop.f32.mrb[0].mxu0
        %v1624 = vpop.f32.mrb[0].mxu0
        %1625 = vdwg.mxu0
        %1626 = vrot.lane.b32.xlu0 %v1302, 104
        %v1627 = vpop.permute.xlu0 %1626
        %1628 = vrot.lane.b32.xlu0 %v1303, 104
        %v1629 = vpop.permute.xlu0 %1628
        %v1631 = vsel %vm624, %v1627, 0
        %v1634 = vsel %vm624, %v1629, 0
        %1636 = vmatprep.subr.bf16.mxu0 0
        %1637 = vmatpush1.bf16.xpose.msra.mxu0 %v1634
        %1638 = vmatprep.subr.bf16.mxu0 0
        %1639 = vmatpush1.bf16.xpose.msra.mxu0 0
        %1640 = vmatprep.subr.bf16.mxu0 0
        %1641 = vmatpush1.bf16.xpose.msra.mxu0 0
        %1642 = vmatprep.subr.bf16.mxu0 0
        %1643 = vmatpush1.bf16.xpose.msra.mxu0 0
        %1644 = vmatprep.subr.bf16.mxu0 0
        %1645 = vmatpush1.bf16.xpose.msra.mxu0 0
        %1646 = vmatprep.subr.bf16.mxu0 0
        %1647 = vmatpush1.bf16.xpose.msra.mxu0 0
        %1648 = vmatprep.subr.bf16.mxu0 0
        %1649 = vmatpush1.bf16.xpose.msra.mxu0 0
        %1650 = vmatprep.subr.bf16.mxu0 0
        %1651 = vmatpush1.bf16.xpose.msra.mxu0 0
        %1652 = vmatprep.subr.bf16.mxu0 0
        %1653 = vmatpush1.bf16.xpose.msra.mxu0 0
        %1654 = vmatprep.subr.bf16.mxu0 0
        %1655 = vmatpush1.bf16.xpose.msra.mxu0 0
        %1656 = vmatprep.subr.bf16.mxu0 0
        %1657 = vmatpush1.bf16.xpose.msra.mxu0 0
        %1658 = vmatprep.subr.bf16.mxu0 0
        %1659 = vmatpush1.bf16.xpose.msra.mxu0 0
        %1660 = vmatprep.subr.bf16.mxu0 0
        %1661 = vmatpush1.bf16.xpose.msra.mxu0 0
        %1662 = vmatprep.subr.bf16.mxu0 0
        %1663 = vmatpush1.bf16.xpose.msra.mxu0 0
        %1664 = vmatprep.subr.bf16.mxu0 0
        %1665 = vmatpush1.bf16.xpose.msra.mxu0 0
        %1666 = vmatprep.subr.bf16.mxu0 0
        %1667 = vmatpush1.bf16.xpose.msra.mxu0 0
        %1668 = vmatprep.mubr.bf16.mxu0 0
        %1669 = vmatmul.mubr.bf16.gmra.mrb[0].mxu0 %v1631
        %v1670 = vpop.f32.mrb[0].mxu0
        %v1671 = vadd.f32 0.0, %v1670
        %v1672 = vpop.f32.mrb[0].mxu0
        %v1673 = vpop.f32.mrb[0].mxu0
        %v1674 = vpop.f32.mrb[0].mxu0
        %1675 = vdwg.mxu0
        %v1676 = vsel %vm1075, %v1671, -inf
        %1677 = vmax.xlane.f32.xlu0 %v1676
        %v1678 = vpop.xlane.xlu0 %1677
        %v1679 = vsub.f32 %v1671, %v1678
        %v1680 = vmul.f32 %v1679, 1.442695
        %v1681 = vpow.pop %v1680
        %v1682 = vsel %vm1075, %v1681, 0.0
        %1683 = vadd.xlane.f32.xlu0 %v1682
        %v1684 = vpop.xlane.xlu0 %1683
        %v1685 = vrcp.pop %v1684
        %v1686 = vmul.f32 %v1681, %v1685
        %v1687 = vpack.c.bf16 %v1686, %v1686
        %1688 = vrot.lane.b32.xlu0 %v1303, 72
        %v1689 = vpop.permute.xlu0 %1688
        %v1692 = vsel %vm1075, %v1687, 0
        %1694 = vmatprep.subr.bf16.mxu0 0
        %1695 = vmatpush1.bf16.msra.mxu0 %v1689
        %1696 = vmatprep.subr.bf16.mxu0 0
        %1697 = vmatpush1.bf16.msra.mxu0 0
        %1698 = vmatprep.subr.bf16.mxu0 0
        %1699 = vmatpush1.bf16.msra.mxu0 0
        %1700 = vmatprep.subr.bf16.mxu0 0
        %1701 = vmatpush1.bf16.msra.mxu0 0
        %1702 = vmatprep.subr.bf16.mxu0 0
        %1703 = vmatpush1.bf16.msra.mxu0 0
        %1704 = vmatprep.subr.bf16.mxu0 0
        %1705 = vmatpush1.bf16.msra.mxu0 0
        %1706 = vmatprep.subr.bf16.mxu0 0
        %1707 = vmatpush1.bf16.msra.mxu0 0
        %1708 = vmatprep.subr.bf16.mxu0 0
        %1709 = vmatpush1.bf16.msra.mxu0 0
        %1710 = vmatprep.subr.bf16.mxu0 0
        %1711 = vmatpush1.bf16.msra.mxu0 0
        %1712 = vmatprep.subr.bf16.mxu0 0
        %1713 = vmatpush1.bf16.msra.mxu0 0
        %1714 = vmatprep.subr.bf16.mxu0 0
        %1715 = vmatpush1.bf16.msra.mxu0 0
        %1716 = vmatprep.subr.bf16.mxu0 0
        %1717 = vmatpush1.bf16.msra.mxu0 0
        %1718 = vmatprep.subr.bf16.mxu0 0
        %1719 = vmatpush1.bf16.msra.mxu0 0
        %1720 = vmatprep.subr.bf16.mxu0 0
        %1721 = vmatpush1.bf16.msra.mxu0 0
        %1722 = vmatprep.subr.bf16.mxu0 0
        %1723 = vmatpush1.bf16.msra.mxu0 0
        %1724 = vmatprep.subr.bf16.mxu0 0
        %1725 = vmatpush1.bf16.msra.mxu0 0
        %1726 = vmatprep.mubr.bf16.mxu0 0
        %1727 = vmatmul.mubr.bf16.gmra.mrb[0].mxu0 %v1692
        %v1728 = vpop.f32.mrb[0].mxu0
        %v1729 = vadd.f32 0.0, %v1728
        %v1730 = vpop.f32.mrb[0].mxu0
        %v1731 = vpop.f32.mrb[0].mxu0
        %v1732 = vpop.f32.mrb[0].mxu0
        %1733 = vdwg.mxu0
        %1735 = vrot.lane.b32.xlu0 %v1513, 8
        %v1736 = vpop.permute.xlu0 %1735
        %1739 = vrot.lane.b32.xlu0 %v1621, 16
        %v1740 = vpop.permute.xlu0 %1739
        %1743 = vrot.lane.b32.xlu0 %v1729, 24
        %v1744 = vpop.permute.xlu0 %1743
        %v1746 = vsel %vm624, %v1404, %v1736
        %v1747 = vsel %vm1075, %v1746, %v1740
        %v1748 = vsel %vm1077, %v1747, %v1744
        %v1749 = vpack.c.bf16 %v1748, %v1748
        %v1750 = vld [vmem:[#allocation10] sm:$0xf]
        %v1751 = vld [vmem:[#allocation10 + $0x4] sm:$0xf]
        %v1752 = vld [vmem:[#allocation10 + $0x8] sm:$0xf]
        %v1753 = vld [vmem:[#allocation10 + $0xc] sm:$0xf]
        %v1754 = vlaneseq
        %v1755 = vshrl.u32 %v1754, 7
        %v1756 = vsub.s32 2, %v1755
        %v1757 = vrot.slane %v550, %v1756
        %v1762 = vunpack.c.l.b16 %v1750
        %v1763 = vunpack.c.l.b16 %v1751
        %v1764 = vunpack.c.l.b16 %v1752
        %v1765 = vunpack.c.l.b16 %v1753
        %v1766 = vpack.c.b16 %v1763, %v1762
        %v1767 = vpack.c.b16 %v1765, %v1764
        %v1771 = vsel %vm576, %v1749, 0
        %1773 = vmatprep.subr.bf16.mxu0 0
        %1774 = vmatpush1.bf16.msra.mxu0 %v1766
        %1775 = vmatprep.subr.bf16.mxu0 0
        %1776 = vmatpush1.bf16.msra.mxu0 %v1767
        %1777 = vmatprep.subr.bf16.mxu0 0
        %1778 = vmatpush1.bf16.msra.mxu0 0
        %1779 = vmatprep.subr.bf16.mxu0 0
        %1780 = vmatpush1.bf16.msra.mxu0 0
        %1781 = vmatprep.subr.bf16.mxu0 0
        %1782 = vmatpush1.bf16.msra.mxu0 0
        %1783 = vmatprep.subr.bf16.mxu0 0
        %1784 = vmatpush1.bf16.msra.mxu0 0
        %1785 = vmatprep.subr.bf16.mxu0 0
        %1786 = vmatpush1.bf16.msra.mxu0 0
        %1787 = vmatprep.subr.bf16.mxu0 0
        %1788 = vmatpush1.bf16.msra.mxu0 0
        %1789 = vmatprep.subr.bf16.mxu0 0
        %1790 = vmatpush1.bf16.msra.mxu0 0
        %1791 = vmatprep.subr.bf16.mxu0 0
        %1792 = vmatpush1.bf16.msra.mxu0 0
        %1793 = vmatprep.subr.bf16.mxu0 0
        %1794 = vmatpush1.bf16.msra.mxu0 0
        %1795 = vmatprep.subr.bf16.mxu0 0
        %1796 = vmatpush1.bf16.msra.mxu0 0
        %1797 = vmatprep.subr.bf16.mxu0 0
        %1798 = vmatpush1.bf16.msra.mxu0 0
        %1799 = vmatprep.subr.bf16.mxu0 0
        %1800 = vmatpush1.bf16.msra.mxu0 0
        %1801 = vmatprep.subr.bf16.mxu0 0
        %1802 = vmatpush1.bf16.msra.mxu0 0
        %1803 = vmatprep.subr.bf16.mxu0 0
        %1804 = vmatpush1.bf16.msra.mxu0 0
        %1805 = vmatprep.mubr.bf16.mxu0 0
        %1806 = vmatmul.mubr.bf16.gmra.mrb[0].mxu0 %v1771
        %v1807 = vpop.f32.mrb[0].mxu0
        %v1808 = vadd.f32 %v1757, %v1807
        %v1809 = vpop.f32.mrb[0].mxu0
        %v1810 = vpop.f32.mrb[0].mxu0
        %v1811 = vpop.f32.mrb[0].mxu0
        %1812 = vdwg.mxu0
        %v1813 = vadd.f32 %v1169, %v1808
        %v1814 = vsel %vm576, %v1813, 0.0
        %1815 = vadd.xlane.f32.xlu0 %v1814
        %v1816 = vpop.xlane.xlu0 %1815
        %v1817 = vmul.f32 %v1816, %v1147
        %v1818 = vmul.f32 %v1813, %v1813
        %v1819 = vsel %vm576, %v1818, 0.0
        %1820 = vadd.xlane.f32.xlu0 %v1819
        %v1821 = vpop.xlane.xlu0 %1820
        %v1822 = vmul.f32 %v1821, %v1147
        %v1823 = vmul.f32 %v1817, %v1817
        %v1824 = vsub.f32 %v1822, %v1823
        %v1825 = vsub.f32 %v1813, %v1817
        %v1826 = vadd.f32 %v1824, 1e-05
        %v1827 = vrsqrt.pop %v1826
        %v1828 = vmul.f32 %v1825, %v1827
        %v1829 = vlaneseq
        %v1830 = vshrl.u32 %v1829, 7
        %v1831 = vsub.s32 5, %v1830
        %v1832 = vrot.slane %v550, %v1831
        %v1833 = vmul.f32 %v1828, %v1832
        %v1834 = vlaneseq
        %v1835 = vshrl.u32 %v1834, 7
        %v1836 = vsub.s32 0, %v1835
        %v1837 = vrot.slane %v551, %v1836
        %v1838 = vadd.f32 %v1833, %v1837
        %v1839 = vpack.c.bf16 %v1838, %v1838
        %v1840 = vld [vmem:[#allocation11] sm:$0xf]
        %v1841 = vld [vmem:[#allocation11 + $0x4] sm:$0xf]
        %v1842 = vld [vmem:[#allocation11 + $0x8] sm:$0xf]
        %v1843 = vld [vmem:[#allocation11 + $0xc] sm:$0xf]
        %v1844 = vld [vmem:[%s11] sm:$0x1]
        %v1846 = vlaneseq
        %v1847 = vshrl.u32 %v1846, 7
        %v1848 = vsub.s32 0, %v1847
        %v1849 = vrot.slane %v1844, %v1848
        %v1855 = vunpack.c.l.b16 %v1840
        %v1856 = vunpack.c.l.b16 %v1841
        %v1857 = vunpack.c.l.b16 %v1842
        %v1858 = vunpack.c.l.b16 %v1843
        %v1859 = vpack.c.b16 %v1856, %v1855
        %v1860 = vpack.c.b16 %v1858, %v1857
        %v1864 = vsel %vm576, %v1839, 0
        %1866 = vmatprep.subr.bf16.mxu0 0
        %1867 = vmatpush1.bf16.msra.mxu0 %v1859
        %1868 = vmatprep.subr.bf16.mxu0 0
        %1869 = vmatpush1.bf16.msra.mxu0 %v1860
        %1870 = vmatprep.subr.bf16.mxu0 0
        %1871 = vmatpush1.bf16.msra.mxu0 0
        %1872 = vmatprep.subr.bf16.mxu0 0
        %1873 = vmatpush1.bf16.msra.mxu0 0
        %1874 = vmatprep.subr.bf16.mxu0 0
        %1875 = vmatpush1.bf16.msra.mxu0 0
        %1876 = vmatprep.subr.bf16.mxu0 0
        %1877 = vmatpush1.bf16.msra.mxu0 0
        %1878 = vmatprep.subr.bf16.mxu0 0
        %1879 = vmatpush1.bf16.msra.mxu0 0
        %1880 = vmatprep.subr.bf16.mxu0 0
        %1881 = vmatpush1.bf16.msra.mxu0 0
        %1882 = vmatprep.subr.bf16.mxu0 0
        %1883 = vmatpush1.bf16.msra.mxu0 0
        %1884 = vmatprep.subr.bf16.mxu0 0
        %1885 = vmatpush1.bf16.msra.mxu0 0
        %1886 = vmatprep.subr.bf16.mxu0 0
        %1887 = vmatpush1.bf16.msra.mxu0 0
        %1888 = vmatprep.subr.bf16.mxu0 0
        %1889 = vmatpush1.bf16.msra.mxu0 0
        %1890 = vmatprep.subr.bf16.mxu0 0
        %1891 = vmatpush1.bf16.msra.mxu0 0
        %1892 = vmatprep.subr.bf16.mxu0 0
        %1893 = vmatpush1.bf16.msra.mxu0 0
        %1894 = vmatprep.subr.bf16.mxu0 0
        %1895 = vmatpush1.bf16.msra.mxu0 0
        %1896 = vmatprep.subr.bf16.mxu0 0
        %1897 = vmatpush1.bf16.msra.mxu0 0
        %1898 = vmatprep.mubr.bf16.mxu0 0
        %1899 = vmatmul.mubr.bf16.gmra.mrb[0].mxu0 %v1864
        %v1900 = vpop.f32.mrb[0].mxu0
        %v1901 = vadd.f32 %v1849, %v1900
        %v1902 = vpop.f32.mrb[0].mxu0
        %v1903 = vpop.f32.mrb[0].mxu0
        %v1904 = vpop.f32.mrb[0].mxu0
        %1905 = vdwg.mxu0
        %v1906 = vmax.f32 %v1901, 0.0
        %v1907 = vpack.c.bf16 %v1906, %v1906
        %v1908 = vld [vmem:[%s8] sm:$0xf]
        %v1909 = vld [vmem:[%s8 + $0x4] sm:$0xf]
        %v1910 = vld [vmem:[%s8 + $0x8] sm:$0xf]
        %v1911 = vld [vmem:[%s8 + $0xc] sm:$0xf]
        %v1912 = vld [vmem:[%s8 + $0x10] sm:$0xf]
        %v1913 = vld [vmem:[%s8 + $0x14] sm:$0xf]
        %v1914 = vld [vmem:[%s8 + $0x18] sm:$0xf]
        %v1915 = vld [vmem:[%s8 + $0x1c] sm:$0xf]
        %v1916 = vlaneseq
        %v1917 = vshrl.u32 %v1916, 7
        %v1918 = vsub.s32 3, %v1917
        %v1919 = vrot.slane %v550, %v1918
        %v1928 = vunpack.c.l.b16 %v1908
        %v1929 = vunpack.c.l.b16 %v1909
        %v1930 = vunpack.c.l.b16 %v1910
        %v1931 = vunpack.c.l.b16 %v1911
        %v1932 = vunpack.c.l.b16 %v1912
        %v1933 = vunpack.c.l.b16 %v1913
        %v1934 = vunpack.c.l.b16 %v1914
        %v1935 = vunpack.c.l.b16 %v1915
        %v1936 = vpack.c.b16 %v1929, %v1928
        %v1937 = vpack.c.b16 %v1931, %v1930
        %v1938 = vpack.c.b16 %v1933, %v1932
        %v1939 = vpack.c.b16 %v1935, %v1934
        %vm1944 = vcmask 523264
        %v1946 = vsel %vm1944, %v1907, 0
        %1948 = vmatprep.subr.bf16.mxu0 0
        %1949 = vmatpush1.bf16.msra.mxu0 %v1936
        %1950 = vmatprep.subr.bf16.mxu0 0
        %1951 = vmatpush1.bf16.msra.mxu0 %v1937
        %1952 = vmatprep.subr.bf16.mxu0 0
        %1953 = vmatpush1.bf16.msra.mxu0 %v1938
        %1954 = vmatprep.subr.bf16.mxu0 0
        %1955 = vmatpush1.bf16.msra.mxu0 %v1939
        %1956 = vmatprep.subr.bf16.mxu0 0
        %1957 = vmatpush1.bf16.msra.mxu0 0
        %1958 = vmatprep.subr.bf16.mxu0 0
        %1959 = vmatpush1.bf16.msra.mxu0 0
        %1960 = vmatprep.subr.bf16.mxu0 0
        %1961 = vmatpush1.bf16.msra.mxu0 0
        %1962 = vmatprep.subr.bf16.mxu0 0
        %1963 = vmatpush1.bf16.msra.mxu0 0
        %1964 = vmatprep.subr.bf16.mxu0 0
        %1965 = vmatpush1.bf16.msra.mxu0 0
        %1966 = vmatprep.subr.bf16.mxu0 0
        %1967 = vmatpush1.bf16.msra.mxu0 0
        %1968 = vmatprep.subr.bf16.mxu0 0
        %1969 = vmatpush1.bf16.msra.mxu0 0
        %1970 = vmatprep.subr.bf16.mxu0 0
        %1971 = vmatpush1.bf16.msra.mxu0 0
        %1972 = vmatprep.subr.bf16.mxu0 0
        %1973 = vmatpush1.bf16.msra.mxu0 0
        %1974 = vmatprep.subr.bf16.mxu0 0
        %1975 = vmatpush1.bf16.msra.mxu0 0
        %1976 = vmatprep.subr.bf16.mxu0 0
        %1977 = vmatpush1.bf16.msra.mxu0 0
        %1978 = vmatprep.subr.bf16.mxu0 0
        %1979 = vmatpush1.bf16.msra.mxu0 0
        %1980 = vmatprep.mubr.bf16.mxu0 0
        %1981 = vmatmul.mubr.bf16.gmra.mrb[0].mxu0 %v1946
        %v1982 = vpop.f32.mrb[0].mxu0
        %v1983 = vadd.f32 %v1919, %v1982
        %v1984 = vpop.f32.mrb[0].mxu0
        %v1985 = vpop.f32.mrb[0].mxu0
        %v1986 = vpop.f32.mrb[0].mxu0
        %1987 = vdwg.mxu0
        %v1988 = vadd.f32 %v1838, %v1983
        %v1989 = vsel %vm576, %v1988, 0.0
        %1990 = vadd.xlane.f32.xlu0 %v1989
        %v1991 = vpop.xlane.xlu0 %1990
        %v1992 = vmul.f32 %v1991, %v1147
        %v1993 = vmul.f32 %v1988, %v1988
        %v1994 = vsel %vm576, %v1993, 0.0
        %1995 = vadd.xlane.f32.xlu0 %v1994
        %v1996 = vpop.xlane.xlu0 %1995
        %v1997 = vmul.f32 %v1996, %v1147
        %v1998 = vmul.f32 %v1992, %v1992
        %v1999 = vsub.f32 %v1997, %v1998
        %v2000 = vsub.f32 %v1988, %v1992
        %v2001 = vadd.f32 %v1999, 1e-05
        %v2002 = vrsqrt.pop %v2001
        %v2003 = vmul.f32 %v2000, %v2002
        %v2004 = vlaneseq
        %v2005 = vshrl.u32 %v2004, 7
        %v2006 = vsub.s32 6, %v2005
        %v2007 = vrot.slane %v550, %v2006
        %v2008 = vmul.f32 %v2003, %v2007
        %v2009 = vlaneseq
        %v2010 = vshrl.u32 %v2009, 7
        %v2011 = vsub.s32 1, %v2010
        %v2012 = vrot.slane %v551, %v2011
        %v2013 = vadd.f32 %v2008, %v2012
        %2014 = vst.msk [vmem:[%s535] sm:$0xff] %vm576, %v2013
        %s2015 = sand.u32 %s322, 1
        %s2016 = scalar_lea.sflag [#allocation4], %s2015
        %s2017 = sand.u32 %s322, 1
        %s2018 = smul.addr %s2017, 8
        %s2019 = scalar_lea.vmem [#allocation13], %s2018
        // Predicated region
        $region97: #{tpu_custom_call.1} parent=71 // pred_check
          %p2020 = pneg %p332
        $region98: #{tpu_custom_call.1} parent=71 // pred_check_branch
          %2022 = sbr.rel (%p2020) target = $region100
        $region99: #{tpu_custom_call.1} parent=71 // pred_region
          %s2024 = ssub.s32 128, 128
          %2025 = vsyncadd %s2016, %s2024
          %s2026 = smul.addr %s31, 128
          %s2027 = scalar_lea.hbm %s13, %s2026
          %s2029 = sshll.u32 %s2019, 4
          %s2030 = int_to_ptr.vmem [resolvable:$true] %s2029
          %2032 = dma.vmem_to_hbm [thread:$0]  %s2030, 128, %s2027, %s2016
        $region100: #{tpu_custom_call.1} parent=71 // pred_fallthru
          _
      $region72: #{tpu_custom_call.1} parent=5 // pred_fallthru
        _
      %p2033 = scmp.le.s32.totalorder 2, %s26
      // Predicated region
      $region101: #{tpu_custom_call.1} parent=5 // pred_check
        %p2034 = pneg %p2033
      $region102: #{tpu_custom_call.1} parent=5 // pred_check_branch
        %2036 = sbr.rel (%p2034) target = $region104
      $region103: #{tpu_custom_call.1} parent=5 // pred_region
        %s2037 = ssub.s32 %s26, 2
        // Predicated region
        $region105: #{tpu_custom_call.1} parent=103 // pred_check
          %p2038 = pneg %p338
        $region106: #{tpu_custom_call.1} parent=103 // pred_check_branch
          %2040 = sbr.rel (%p2038) target = $region108
        $region107: #{tpu_custom_call.1} parent=103 // pred_region
          %s2041 = sand.u32 %s323, 1
          %s2042 = scalar_lea.sflag [#allocation4], %s2041
          %s2043 = sand.u32 %s323, 1
          %s2044 = smul.addr %s2043, 8
          %s2045 = scalar_lea.vmem [#allocation13], %s2044
          %2046 = dma.done %s2042, 128
        $region108: #{tpu_custom_call.1} parent=103 // pred_fallthru
          _
      $region104: #{tpu_custom_call.1} parent=5 // pred_fallthru
        _
    $region6: #{tpu_custom_call.1} parent=1 // loop_footer
      %s30 = sadd.s32 1, %s26
    $region7: #{tpu_custom_call.1} parent=1 // loop_footer_branch
      %25 = sbr.rel target = $region3
    $region8: #{tpu_custom_call.1} parent=1 // loop_exit
      _
    %2047 = vsyncpa [#allocation3], 1
    %s2048 = scalar_lea.sflag [#allocation3], 1
    %2049 = vsyncpa %s2048, 1
    %2050 = vsyncpa [#allocation6], 1
    %2051 = vsyncpa [#allocation9], 1
    %2052 = vsyncpa [#allocation12], 1
    %2053 = vsyncpa [#allocation4], 1
    %s2054 = scalar_lea.sflag [#allocation4], 1
    %2055 = vsyncpa %s2054, 1

</llo_original>
